<compile_context>
chip_gen: v5e
topology: v5e:2x2
jax: 0.10.0
libtpu: 0.0.40
codegen_flags: <defaults>
</compile_context>

<pallas_src>
import math

import jax
import jax.numpy as jnp
from jax import lax
from jax.experimental import pallas as pl
from jax.experimental.pallas import tpu as pltpu


# --------------------------------------------------------------------------- #
# Fused projection + bidirectional recurrence kernel
# --------------------------------------------------------------------------- #
def _bilstm_fused_kernel(len_ref, xf_ref, xb_ref, wih_ref, whh_ref, b_ref,
                         out_ref, xpf_scr, xpb_scr, h_scr, c_scr):
    tc, Bp, D = xf_ref.shape           # time-chunk, padded batch, in_dim
    H = whh_ref.shape[1]               # hidden size (per direction)
    G = 4 * H                          # per-direction gate width
    ci = pl.program_id(0)
    n_chunks = pl.num_programs(0)
    T_total = n_chunks * tc            # padded sequence length
    cd = wih_ref.dtype                 # MXU compute dtype (f32 or bf16)

    @pl.when(ci == 0)
    def _init():
        h_scr[...] = jnp.zeros(h_scr.shape, h_scr.dtype)
        c_scr[...] = jnp.zeros(c_scr.shape, c_scr.dtype)

    # ---- hoisted per-chunk input projection (both directions) --------------
    # One (tc*Bp, D) @ (D, 4H) MXU matmul per direction; W_ih / bias stay
    # VMEM-resident (constant index maps), result lands in VMEM scratch in
    # time-major layout so per-step access is a leading-index view.
    xf = xf_ref[...].reshape(tc * Bp, D).astype(cd)
    xb = xb_ref[...].reshape(tc * Bp, D).astype(cd)
    xpf_scr[...] = (jnp.dot(xf, wih_ref[0], preferred_element_type=jnp.float32)
                    + b_ref[0]).reshape(tc, Bp, G)
    xpb_scr[...] = (jnp.dot(xb, wih_ref[1], preferred_element_type=jnp.float32)
                    + b_ref[1]).reshape(tc, Bp, G)

    # Hoisted loads (outside the serial loop).
    whh_f = whh_ref[0]                 # (H, 4H)
    whh_b = whh_ref[1]                 # (H, 4H)
    lens = len_ref[...]                # (Bp, 1) int32

    def step(s, carry):
        h_f, c_f, h_b, c_b = carry     # (Bp, H) f32 each
        t_f = ci * tc + s                       # forward global timestep
        t_b = T_total - 1 - t_f                 # backward global timestep

        # ---- forward direction ----
        gf = xpf_scr[s] + jnp.dot(h_f.astype(cd), whh_f,
                                  preferred_element_type=jnp.float32)
        i_f = jax.nn.sigmoid(gf[:, 0 * H:1 * H])
        f_f = jax.nn.sigmoid(gf[:, 1 * H:2 * H])
        g_f = jnp.tanh(gf[:, 2 * H:3 * H])
        o_f = jax.nn.sigmoid(gf[:, 3 * H:4 * H])
        c_f_new = f_f * c_f + i_f * g_f
        h_f_new = o_f * jnp.tanh(c_f_new)
        upd_f = t_f < lens                       # (Bp, 1) bool
        h_f = jnp.where(upd_f, h_f_new, h_f)
        c_f = jnp.where(upd_f, c_f_new, c_f)

        # ---- backward direction (reverse-ordered chunk; local idx tc-1-s) ----
        gb = xpb_scr[tc - 1 - s] + jnp.dot(h_b.astype(cd), whh_b,
                                           preferred_element_type=jnp.float32)
        i_b = jax.nn.sigmoid(gb[:, 0 * H:1 * H])
        f_b = jax.nn.sigmoid(gb[:, 1 * H:2 * H])
        g_b = jnp.tanh(gb[:, 2 * H:3 * H])
        o_b = jax.nn.sigmoid(gb[:, 3 * H:4 * H])
        c_b_new = f_b * c_b + i_b * g_b
        h_b_new = o_b * jnp.tanh(c_b_new)
        upd_b = t_b < lens                       # (Bp, 1) bool
        h_b = jnp.where(upd_b, h_b_new, h_b)
        c_b = jnp.where(upd_b, c_b_new, c_b)

        return (h_f, c_f, h_b, c_b)

    carry0 = (h_scr[0], c_scr[0], h_scr[1], c_scr[1])
    h_f, c_f, h_b, c_b = lax.fori_loop(0, tc, step, carry0,
                                       unroll=min(8, tc))
    h_scr[0] = h_f
    c_scr[0] = c_f
    h_scr[1] = h_b
    c_scr[1] = c_b

    # Write every chunk (constant out block index -> only the final value lands
    # in HBM; free insurance against per-step writeback behavior).
    out_ref[0] = h_f
    out_ref[1] = h_b


# --------------------------------------------------------------------------- #
# Public wrapper
# --------------------------------------------------------------------------- #
def lstm_integrator(inputs, context_lengths, params, *,
                    compute_dtype=jnp.float32, time_chunk=32):
    """inputs: (B, T, D) float32 (batch_first); context_lengths: (B,) int.
    Returns (B, 2H) = concat(h_fwd_final, h_bwd_final)."""
    B, T, D = inputs.shape
    H = params["whh_f"].shape[0]
    G = 4 * H

    # Stack per-direction weights once; cast MXU operands to compute_dtype.
    w_ih = jnp.stack([params["wih_f"], params["wih_b"]]).astype(compute_dtype)  # (2, D, 4H)
    w_hh = jnp.stack([params["whh_f"], params["whh_b"]]).astype(compute_dtype)  # (2, H, 4H)
    bias = jnp.stack([params["b_f"], params["b_b"]]).astype(jnp.float32)        # (2, 1, 4H)

    tc = max(1, min(time_chunk, T))
    n_chunks = -(-T // tc)
    T_pad = n_chunks * tc
    Bp = -(-B // 8) * 8                     # sublane-aligned batch

    # Time-major + batch/time padding (single XLA copy of x; padded timesteps /
    # rows are masked by the `t < len` test inside the kernel).
    # TODO(synk): fold this reorder into the chunk DMA (batch-first blocks +
    # in-kernel transpose) if this extra HBM pass over x ever shows up.
    x_tm = jnp.transpose(inputs, (1, 0, 2)).astype(jnp.float32)
    if T_pad != T or Bp != B:
        x_tm = jnp.pad(x_tm, ((0, T_pad - T), (0, Bp - B), (0, 0)))

    lens = jnp.zeros((Bp, 1), jnp.int32).at[:B, 0].set(
        context_lengths.astype(jnp.int32))

    # VMEM budget (double-buffered inputs + scratches); cap at 64 MiB so the
    # same tiling is valid on v7x as well as v5e/v6e.
    cdb = jnp.dtype(compute_dtype).itemsize
    est = (2 * 2 * tc * Bp * D * 4          # two x streams, 2 buffers each
           + 2 * 2 * D * G * cdb            # W_ih (both dirs), 2 buffers
           + 2 * 2 * H * G * cdb            # W_hh
           + 2 * 2 * 1 * G * 4              # bias
           + 2 * Bp * 1 * 4                 # lens
           + 2 * tc * Bp * G * 4            # xp scratches
           + 2 * 2 * Bp * H * 4             # h, c scratch
           + 2 * 2 * Bp * H * 4)            # out buffers
    vmem_limit = min(max(32 << 20, int(est * 1.5) + (2 << 20)), 64 << 20)

    out2 = pl.pallas_call(
        _bilstm_fused_kernel,
        out_shape=jax.ShapeDtypeStruct((2, Bp, H), jnp.float32),
        grid=(n_chunks,),
        in_specs=[
            pl.BlockSpec((Bp, 1), lambda i: (0, 0)),                        # lengths
            pl.BlockSpec((tc, Bp, D), lambda i: (i, 0, 0)),                 # fwd x chunks
            pl.BlockSpec((tc, Bp, D), lambda i: (n_chunks - 1 - i, 0, 0)),  # bwd x chunks
            pl.BlockSpec((2, D, G), lambda i: (0, 0, 0)),                   # W_ih (resident)
            pl.BlockSpec((2, H, G), lambda i: (0, 0, 0)),                   # W_hh (resident)
            pl.BlockSpec((2, 1, G), lambda i: (0, 0, 0)),                   # bias (resident)
        ],
        out_specs=pl.BlockSpec((2, Bp, H), lambda i: (0, 0, 0)),
        scratch_shapes=[
            pltpu.VMEM((tc, Bp, G), jnp.float32),    # projected fwd chunk
            pltpu.VMEM((tc, Bp, G), jnp.float32),    # projected bwd chunk
            pltpu.VMEM((2, Bp, H), jnp.float32),     # h state [fwd, bwd]
            pltpu.VMEM((2, Bp, H), jnp.float32),     # c state [fwd, bwd]
        ],
        compiler_params=pltpu.CompilerParams(
            dimension_semantics=("arbitrary",),
            vmem_limit_bytes=vmem_limit),
    )(lens, x_tm, x_tm, w_ih, w_hh, bias)

    return jnp.concatenate([out2[0, :B], out2[1, :B]], axis=-1)


# --------------------------------------------------------------------------- #
# Synthetic params + pure-JAX reference
# --------------------------------------------------------------------------- #
def make_params(key, in_dim, hidden_dim):
    """Deterministic synthetic init (PyTorch-style U(-1/sqrt(H), 1/sqrt(H)))."""
    scale = 1.0 / jnp.sqrt(jnp.float32(hidden_dim))
    keys = jax.random.split(key, 6)
    u = lambda k, shape: jax.random.uniform(k, shape, jnp.float32, -scale, scale)
    return {
        "wih_f": u(keys[0], (in_dim, 4 * hidden_dim)),
        "whh_f": u(keys[1], (hidden_dim, 4 * hidden_dim)),
        "b_f":   u(keys[2], (1, 4 * hidden_dim)),   # b_ih + b_hh folded together
        "wih_b": u(keys[3], (in_dim, 4 * hidden_dim)),
        "whh_b": u(keys[4], (hidden_dim, 4 * hidden_dim)),
        "b_b":   u(keys[5], (1, 4 * hidden_dim)),
    }


def lstm_integrator_ref(inputs, context_lengths, params, *,
                        compute_dtype=jnp.float32):
    """Pure-JAX reference (per-direction, batch-first), matmul casts matched."""
    B, T, D = inputs.shape
    H = params["whh_f"].shape[0]
    cd = compute_dtype
    lens = context_lengths.astype(jnp.int32).reshape(B, 1)
    x = inputs.astype(jnp.float32)

    def run(wih, whh, b, reverse):
        xp = jnp.dot(x.reshape(B * T, D).astype(cd), wih.astype(cd),
                     preferred_element_type=jnp.float32).reshape(B, T, 4 * H) + b
        whh_c = whh.astype(cd)
        h = jnp.zeros((B, H), jnp.float32)
        c = jnp.zeros((B, H), jnp.float32)
        order = range(T - 1, -1, -1) if reverse else range(T)
        for t in order:
            gates = xp[:, t] + jnp.dot(h.astype(cd), whh_c,
                                       preferred_element_type=jnp.float32)
            i = jax.nn.sigmoid(gates[:, :H])
            f = jax.nn.sigmoid(gates[:, H:2 * H])
            g = jnp.tanh(gates[:, 2 * H:3 * H])
            o = jax.nn.sigmoid(gates[:, 3 * H:])
            c_new = f * c + i * g
            h_new = o * jnp.tanh(c_new)
            m = t < lens
            h = jnp.where(m, h_new, h)
            c = jnp.where(m, c_new, c)
        return h

    hf = run(params["wih_f"], params["whh_f"], params["b_f"], reverse=False)
    hb = run(params["wih_b"], params["whh_b"], params["b_b"], reverse=True)
    return jnp.concatenate([hf, hb], axis=-1)


# --------------------------------------------------------------------------- #
if __name__ == "__main__":
    # Small shapes consistent with the module's forward:
    # inputs (B, T, in_dim), context_lengths (B,)
    B, T, IN_DIM, HIDDEN = 2, 8, 64, 32

    key = jax.random.PRNGKey(0)
    k_x, k_p = jax.random.split(key)
    inputs = jax.random.normal(k_x, (B, T, IN_DIM), jnp.float32)
    context_lengths = jnp.array([8, 5], dtype=jnp.int32)
    params = make_params(k_p, IN_DIM, HIDDEN)

    # f32 path (tight correctness check vs the pure-JAX reference).
    out_f32 = jax.block_until_ready(
        lstm_integrator(inputs, context_lengths, params,
                        compute_dtype=jnp.float32, time_chunk=32))
    ref_f32 = lstm_integrator_ref(inputs, context_lengths, params,
                                  compute_dtype=jnp.float32)
    assert out_f32.shape == (B, 2 * HIDDEN)
    assert jnp.allclose(out_f32, ref_f32, atol=1e-4, rtol=1e-4), "f32 mismatch"

    # Exercise the multi-chunk / partial-unroll path too (tc=4 -> 2 chunks).
    out_chunked = jax.block_until_ready(
        lstm_integrator(inputs, context_lengths, params,
                        compute_dtype=jnp.float32, time_chunk=4))
    assert jnp.allclose(out_chunked, ref_f32, atol=1e-4, rtol=1e-4), "chunk mismatch"

    # bf16-MXU path (production setting): compare against a matched-cast reference.
    out_bf16 = jax.block_until_ready(
        lstm_integrator(inputs, context_lengths, params,
                        compute_dtype=jnp.bfloat16, time_chunk=32))
    ref_bf16 = lstm_integrator_ref(inputs, context_lengths, params,
                                   compute_dtype=jnp.bfloat16)
    assert jnp.allclose(out_bf16, ref_bf16, atol=2e-2, rtol=2e-2), "bf16 mismatch"

    print("KERNEL_OK")
</pallas_src>

<mosaic_0001>
module attributes {stable_mosaic.version = 11 : i64} {
  func.func @_bilstm_fused_kernel(%arg0: i32, %arg1: memref<8x1xi32, #tpu.memory_space<vmem>>, %arg2: memref<8x8x64xf32, #tpu.memory_space<vmem>>, %arg3: memref<8x8x64xf32, #tpu.memory_space<vmem>>, %arg4: memref<2x64x128xf32, #tpu.memory_space<vmem>>, %arg5: memref<2x32x128xf32, #tpu.memory_space<vmem>>, %arg6: memref<2x1x128xf32, #tpu.memory_space<vmem>>, %arg7: memref<2x8x32xf32, #tpu.memory_space<vmem>>, %arg8: memref<8x8x128xf32, #tpu.memory_space<vmem>>, %arg9: memref<8x8x128xf32, #tpu.memory_space<vmem>>, %arg10: memref<2x8x32xf32, #tpu.memory_space<vmem>>, %arg11: memref<2x8x32xf32, #tpu.memory_space<vmem>>) attributes {dimension_semantics = [#tpu.dimension_semantics<arbitrary>], iteration_bounds = array<i64: 1>, scalar_prefetch = 0 : i64, scratch_operands = 4 : i64, tpu.core_type = #tpu.core_type<tc>, window_params = [{pipeline_mode = #tpu.pipeline_mode<synchronous>, transform_indices = @transform_0, window_bounds = array<i64: 8, 1>}, {transform_indices = @transform_1, window_bounds = array<i64: 8, 8, 64>}, {transform_indices = @transform_2, window_bounds = array<i64: 8, 8, 64>}, {pipeline_mode = #tpu.pipeline_mode<synchronous>, transform_indices = @transform_3, window_bounds = array<i64: 2, 64, 128>}, {pipeline_mode = #tpu.pipeline_mode<synchronous>, transform_indices = @transform_4, window_bounds = array<i64: 2, 32, 128>}, {pipeline_mode = #tpu.pipeline_mode<synchronous>, transform_indices = @transform_5, window_bounds = array<i64: 2, 1, 128>}, {pipeline_mode = #tpu.pipeline_mode<synchronous>, transform_indices = @transform_6, window_bounds = array<i64: 2, 8, 32>}]} {
    %c0_i32 = arith.constant 0 : i32
    %0 = arith.cmpi eq, %arg0, %c0_i32 : i32
    %1 = arith.extui %0 : i1 to i32
    %c0_i32_0 = arith.constant 0 : i32
    %2 = arith.cmpi ne, %1, %c0_i32_0 : i32
    scf.if %2 {
      %cst_183 = arith.constant 0.000000e+00 : f32
      %696 = vector.broadcast %cst_183 : f32 to vector<2x8x32xf32>
      %c0_184 = arith.constant 0 : index
      %c0_185 = arith.constant 0 : index
      %c0_186 = arith.constant 0 : index
      %697 = vector.load %arg10[%c0_184, %c0_185, %c0_186] : memref<2x8x32xf32, #tpu.memory_space<vmem>>, vector<2x8x32xf32>
      tpu.vector_store %arg10[%c0_184, %c0_185, %c0_186], %696 {strides = array<i32>} : memref<2x8x32xf32, #tpu.memory_space<vmem>>, vector<2x8x32xf32>,
      %cst_187 = arith.constant 0.000000e+00 : f32
      %698 = vector.broadcast %cst_187 : f32 to vector<2x8x32xf32>
      %c0_188 = arith.constant 0 : index
      %c0_189 = arith.constant 0 : index
      %c0_190 = arith.constant 0 : index
      %699 = vector.load %arg11[%c0_188, %c0_189, %c0_190] : memref<2x8x32xf32, #tpu.memory_space<vmem>>, vector<2x8x32xf32>
      tpu.vector_store %arg11[%c0_188, %c0_189, %c0_190], %698 {strides = array<i32>} : memref<2x8x32xf32, #tpu.memory_space<vmem>>, vector<2x8x32xf32>,
    } else {
    }
    %c0 = arith.constant 0 : index
    %c0_1 = arith.constant 0 : index
    %c0_2 = arith.constant 0 : index
    %3 = vector.load %arg2[%c0, %c0_1, %c0_2] : memref<8x8x64xf32, #tpu.memory_space<vmem>>, vector<8x8x64xf32>
    %4 = vector.shape_cast %3 : vector<8x8x64xf32> to vector<64x64xf32>
    %c0_3 = arith.constant 0 : index
    %c0_4 = arith.constant 0 : index
    %c0_5 = arith.constant 0 : index
    %5 = vector.load %arg3[%c0_3, %c0_4, %c0_5] : memref<8x8x64xf32, #tpu.memory_space<vmem>>, vector<8x8x64xf32>
    %6 = vector.shape_cast %5 : vector<8x8x64xf32> to vector<64x64xf32>
    %c0_6 = arith.constant 0 : index
    %c0_7 = arith.constant 0 : index
    %c0_8 = arith.constant 0 : index
    %7 = vector.load %arg4[%c0_6, %c0_7, %c0_8] : memref<2x64x128xf32, #tpu.memory_space<vmem>>, vector<1x64x128xf32>
    %8 = vector.shape_cast %7 : vector<1x64x128xf32> to vector<64x128xf32>
    %cst = arith.constant dense<0.000000e+00> : vector<64x128xf32>
    %9 = tpu.matmul %4, %8, %cst {dimension_numbers = #tpu.dot_dimension_numbers<[1], [0], [0], [1], [0, 0, 1, 1], [], []>} : vector<64x64xf32>, vector<64x128xf32>, vector<64x128xf32> -> vector<64x128xf32>
    %c0_9 = arith.constant 0 : index
    %c0_10 = arith.constant 0 : index
    %c0_11 = arith.constant 0 : index
    %10 = vector.load %arg6[%c0_9, %c0_10, %c0_11] : memref<2x1x128xf32, #tpu.memory_space<vmem>>, vector<1x1x128xf32>
    %11 = vector.shape_cast %10 : vector<1x1x128xf32> to vector<1x128xf32>
    %12 = vector.broadcast %11 : vector<1x128xf32> to vector<64x128xf32>
    %13 = arith.addf %9, %12 : vector<64x128xf32>
    %14 = vector.shape_cast %13 : vector<64x128xf32> to vector<8x8x128xf32>
    %c0_12 = arith.constant 0 : index
    %c0_13 = arith.constant 0 : index
    %c0_14 = arith.constant 0 : index
    %15 = vector.load %arg8[%c0_12, %c0_13, %c0_14] : memref<8x8x128xf32, #tpu.memory_space<vmem>>, vector<8x8x128xf32>
    tpu.vector_store %arg8[%c0_12, %c0_13, %c0_14], %14 {strides = array<i32>} : memref<8x8x128xf32, #tpu.memory_space<vmem>>, vector<8x8x128xf32>,
    %c1 = arith.constant 1 : index
    %c0_15 = arith.constant 0 : index
    %c0_16 = arith.constant 0 : index
    %16 = vector.load %arg4[%c1, %c0_15, %c0_16] : memref<2x64x128xf32, #tpu.memory_space<vmem>>, vector<1x64x128xf32>
    %17 = vector.shape_cast %16 : vector<1x64x128xf32> to vector<64x128xf32>
    %cst_17 = arith.constant dense<0.000000e+00> : vector<64x128xf32>
    %18 = tpu.matmul %6, %17, %cst_17 {dimension_numbers = #tpu.dot_dimension_numbers<[1], [0], [0], [1], [0, 0, 1, 1], [], []>} : vector<64x64xf32>, vector<64x128xf32>, vector<64x128xf32> -> vector<64x128xf32>
    %c1_18 = arith.constant 1 : index
    %c0_19 = arith.constant 0 : index
    %c0_20 = arith.constant 0 : index
    %19 = vector.load %arg6[%c1_18, %c0_19, %c0_20] : memref<2x1x128xf32, #tpu.memory_space<vmem>>, vector<1x1x128xf32>
    %20 = vector.shape_cast %19 : vector<1x1x128xf32> to vector<1x128xf32>
    %21 = vector.broadcast %20 : vector<1x128xf32> to vector<64x128xf32>
    %22 = arith.addf %18, %21 : vector<64x128xf32>
    %23 = vector.shape_cast %22 : vector<64x128xf32> to vector<8x8x128xf32>
    %c0_21 = arith.constant 0 : index
    %c0_22 = arith.constant 0 : index
    %c0_23 = arith.constant 0 : index
    %24 = vector.load %arg9[%c0_21, %c0_22, %c0_23] : memref<8x8x128xf32, #tpu.memory_space<vmem>>, vector<8x8x128xf32>
    tpu.vector_store %arg9[%c0_21, %c0_22, %c0_23], %23 {strides = array<i32>} : memref<8x8x128xf32, #tpu.memory_space<vmem>>, vector<8x8x128xf32>,
    %c0_24 = arith.constant 0 : index
    %c0_25 = arith.constant 0 : index
    %c0_26 = arith.constant 0 : index
    %25 = vector.load %arg5[%c0_24, %c0_25, %c0_26] : memref<2x32x128xf32, #tpu.memory_space<vmem>>, vector<1x32x128xf32>
    %26 = vector.shape_cast %25 : vector<1x32x128xf32> to vector<32x128xf32>
    %c1_27 = arith.constant 1 : index
    %c0_28 = arith.constant 0 : index
    %c0_29 = arith.constant 0 : index
    %27 = vector.load %arg5[%c1_27, %c0_28, %c0_29] : memref<2x32x128xf32, #tpu.memory_space<vmem>>, vector<1x32x128xf32>
    %28 = vector.shape_cast %27 : vector<1x32x128xf32> to vector<32x128xf32>
    %c0_30 = arith.constant 0 : index
    %c0_31 = arith.constant 0 : index
    %29 = vector.load %arg1[%c0_30, %c0_31] : memref<8x1xi32, #tpu.memory_space<vmem>>, vector<8x1xi32>
    %c0_32 = arith.constant 0 : index
    %c0_33 = arith.constant 0 : index
    %c0_34 = arith.constant 0 : index
    %30 = vector.load %arg10[%c0_32, %c0_33, %c0_34] : memref<2x8x32xf32, #tpu.memory_space<vmem>>, vector<1x8x32xf32>
    %31 = vector.shape_cast %30 : vector<1x8x32xf32> to vector<8x32xf32>
    %c0_35 = arith.constant 0 : index
    %c0_36 = arith.constant 0 : index
    %c0_37 = arith.constant 0 : index
    %32 = vector.load %arg11[%c0_35, %c0_36, %c0_37] : memref<2x8x32xf32, #tpu.memory_space<vmem>>, vector<1x8x32xf32>
    %33 = vector.shape_cast %32 : vector<1x8x32xf32> to vector<8x32xf32>
    %c1_38 = arith.constant 1 : index
    %c0_39 = arith.constant 0 : index
    %c0_40 = arith.constant 0 : index
    %34 = vector.load %arg10[%c1_38, %c0_39, %c0_40] : memref<2x8x32xf32, #tpu.memory_space<vmem>>, vector<1x8x32xf32>
    %35 = vector.shape_cast %34 : vector<1x8x32xf32> to vector<8x32xf32>
    %c1_41 = arith.constant 1 : index
    %c0_42 = arith.constant 0 : index
    %c0_43 = arith.constant 0 : index
    %36 = vector.load %arg11[%c1_41, %c0_42, %c0_43] : memref<2x8x32xf32, #tpu.memory_space<vmem>>, vector<1x8x32xf32>
    %37 = vector.shape_cast %36 : vector<1x8x32xf32> to vector<8x32xf32>
    %c0_i32_44 = arith.constant 0 : i32
    %c8_i32 = arith.constant 8 : i32
    %38 = arith.muli %arg0, %c8_i32 : i32
    %39 = arith.addi %38, %c0_i32_44 : i32
    %c7_i32 = arith.constant 7 : i32
    %40 = arith.subi %c7_i32, %39 : i32
    %41 = arith.index_cast %c0_i32_44 : i32 to index
    %c0_45 = arith.constant 0 : index
    %c0_46 = arith.constant 0 : index
    %42 = vector.load %arg8[%41, %c0_45, %c0_46] : memref<8x8x128xf32, #tpu.memory_space<vmem>>, vector<1x8x128xf32>
    %43 = vector.shape_cast %42 : vector<1x8x128xf32> to vector<8x128xf32>
    %cst_47 = arith.constant dense<0.000000e+00> : vector<8x128xf32>
    %44 = tpu.matmul %31, %26, %cst_47 {dimension_numbers = #tpu.dot_dimension_numbers<[1], [0], [0], [1], [0, 0, 1, 1], [], []>} : vector<8x32xf32>, vector<32x128xf32>, vector<8x128xf32> -> vector<8x128xf32>
    %45 = arith.addf %43, %44 : vector<8x128xf32>
    %46 = vector.extract_strided_slice %45 {offsets = [0, 0], sizes = [8, 32], strides = [1, 1]} : vector<8x128xf32> to vector<8x32xf32>
    %47 = arith.negf %46 : vector<8x32xf32>
    %48 = math.exp %47 : vector<8x32xf32>
    %cst_48 = arith.constant 1.000000e+00 : f32
    %49 = vector.broadcast %cst_48 : f32 to vector<8x32xf32>
    %50 = arith.addf %49, %48 : vector<8x32xf32>
    %51 = arith.divf %49, %50 : vector<8x32xf32>
    %52 = vector.extract_strided_slice %45 {offsets = [0, 32], sizes = [8, 32], strides = [1, 1]} : vector<8x128xf32> to vector<8x32xf32>
    %53 = arith.negf %52 : vector<8x32xf32>
    %54 = math.exp %53 : vector<8x32xf32>
    %cst_49 = arith.constant 1.000000e+00 : f32
    %55 = vector.broadcast %cst_49 : f32 to vector<8x32xf32>
    %56 = arith.addf %55, %54 : vector<8x32xf32>
    %57 = arith.divf %55, %56 : vector<8x32xf32>
    %58 = vector.extract_strided_slice %45 {offsets = [0, 64], sizes = [8, 32], strides = [1, 1]} : vector<8x128xf32> to vector<8x32xf32>
    %59 = math.tanh %58 : vector<8x32xf32>
    %60 = vector.extract_strided_slice %45 {offsets = [0, 96], sizes = [8, 32], strides = [1, 1]} : vector<8x128xf32> to vector<8x32xf32>
    %61 = arith.negf %60 : vector<8x32xf32>
    %62 = math.exp %61 : vector<8x32xf32>
    %cst_50 = arith.constant 1.000000e+00 : f32
    %63 = vector.broadcast %cst_50 : f32 to vector<8x32xf32>
    %64 = arith.addf %63, %62 : vector<8x32xf32>
    %65 = arith.divf %63, %64 : vector<8x32xf32>
    %66 = arith.mulf %57, %33 : vector<8x32xf32>
    %67 = arith.mulf %51, %59 : vector<8x32xf32>
    %68 = arith.addf %66, %67 : vector<8x32xf32>
    %69 = math.tanh %68 : vector<8x32xf32>
    %70 = arith.mulf %65, %69 : vector<8x32xf32>
    %71 = vector.broadcast %39 : i32 to vector<8x1xi32>
    %72 = arith.cmpi slt, %71, %29 : vector<8x1xi32>
    %73 = vector.shape_cast %72 : vector<8x1xi1> to vector<8x1xi1>
    %74 = vector.broadcast %73 : vector<8x1xi1> to vector<8x32xi1>
    %75 = arith.select %74, %70, %31 : vector<8x32xi1>, vector<8x32xf32>
    %76 = vector.shape_cast %72 : vector<8x1xi1> to vector<8x1xi1>
    %77 = vector.broadcast %76 : vector<8x1xi1> to vector<8x32xi1>
    %78 = arith.select %77, %68, %33 : vector<8x32xi1>, vector<8x32xf32>
    %c7_i32_51 = arith.constant 7 : i32
    %79 = arith.subi %c7_i32_51, %c0_i32_44 : i32
    %80 = arith.index_cast %79 : i32 to index
    %c0_52 = arith.constant 0 : index
    %c0_53 = arith.constant 0 : index
    %81 = vector.load %arg9[%80, %c0_52, %c0_53] : memref<8x8x128xf32, #tpu.memory_space<vmem>>, vector<1x8x128xf32>
    %82 = vector.shape_cast %81 : vector<1x8x128xf32> to vector<8x128xf32>
    %cst_54 = arith.constant dense<0.000000e+00> : vector<8x128xf32>
    %83 = tpu.matmul %35, %28, %cst_54 {dimension_numbers = #tpu.dot_dimension_numbers<[1], [0], [0], [1], [0, 0, 1, 1], [], []>} : vector<8x32xf32>, vector<32x128xf32>, vector<8x128xf32> -> vector<8x128xf32>
    %84 = arith.addf %82, %83 : vector<8x128xf32>
    %85 = vector.extract_strided_slice %84 {offsets = [0, 0], sizes = [8, 32], strides = [1, 1]} : vector<8x128xf32> to vector<8x32xf32>
    %86 = arith.negf %85 : vector<8x32xf32>
    %87 = math.exp %86 : vector<8x32xf32>
    %cst_55 = arith.constant 1.000000e+00 : f32
    %88 = vector.broadcast %cst_55 : f32 to vector<8x32xf32>
    %89 = arith.addf %88, %87 : vector<8x32xf32>
    %90 = arith.divf %88, %89 : vector<8x32xf32>
    %91 = vector.extract_strided_slice %84 {offsets = [0, 32], sizes = [8, 32], strides = [1, 1]} : vector<8x128xf32> to vector<8x32xf32>
    %92 = arith.negf %91 : vector<8x32xf32>
    %93 = math.exp %92 : vector<8x32xf32>
    %cst_56 = arith.constant 1.000000e+00 : f32
    %94 = vector.broadcast %cst_56 : f32 to vector<8x32xf32>
    %95 = arith.addf %94, %93 : vector<8x32xf32>
    %96 = arith.divf %94, %95 : vector<8x32xf32>
    %97 = vector.extract_strided_slice %84 {offsets = [0, 64], sizes = [8, 32], strides = [1, 1]} : vector<8x128xf32> to vector<8x32xf32>
    %98 = math.tanh %97 : vector<8x32xf32>
    %99 = vector.extract_strided_slice %84 {offsets = [0, 96], sizes = [8, 32], strides = [1, 1]} : vector<8x128xf32> to vector<8x32xf32>
    %100 = arith.negf %99 : vector<8x32xf32>
    %101 = math.exp %100 : vector<8x32xf32>
    %cst_57 = arith.constant 1.000000e+00 : f32
    %102 = vector.broadcast %cst_57 : f32 to vector<8x32xf32>
    %103 = arith.addf %102, %101 : vector<8x32xf32>
    %104 = arith.divf %102, %103 : vector<8x32xf32>
    %105 = arith.mulf %96, %37 : vector<8x32xf32>
    %106 = arith.mulf %90, %98 : vector<8x32xf32>
    %107 = arith.addf %105, %106 : vector<8x32xf32>
    %108 = math.tanh %107 : vector<8x32xf32>
    %109 = arith.mulf %104, %108 : vector<8x32xf32>
    %110 = vector.broadcast %40 : i32 to vector<8x1xi32>
    %111 = arith.cmpi slt, %110, %29 : vector<8x1xi32>
    %112 = vector.shape_cast %111 : vector<8x1xi1> to vector<8x1xi1>
    %113 = vector.broadcast %112 : vector<8x1xi1> to vector<8x32xi1>
    %114 = arith.select %113, %109, %35 : vector<8x32xi1>, vector<8x32xf32>
    %115 = vector.shape_cast %111 : vector<8x1xi1> to vector<8x1xi1>
    %116 = vector.broadcast %115 : vector<8x1xi1> to vector<8x32xi1>
    %117 = arith.select %116, %107, %37 : vector<8x32xi1>, vector<8x32xf32>
    %c1_i32 = arith.constant 1 : i32
    %c8_i32_58 = arith.constant 8 : i32
    %118 = arith.muli %arg0, %c8_i32_58 : i32
    %119 = arith.addi %118, %c1_i32 : i32
    %c7_i32_59 = arith.constant 7 : i32
    %120 = arith.subi %c7_i32_59, %119 : i32
    %121 = arith.index_cast %c1_i32 : i32 to index
    %c0_60 = arith.constant 0 : index
    %c0_61 = arith.constant 0 : index
    %122 = vector.load %arg8[%121, %c0_60, %c0_61] : memref<8x8x128xf32, #tpu.memory_space<vmem>>, vector<1x8x128xf32>
    %123 = vector.shape_cast %122 : vector<1x8x128xf32> to vector<8x128xf32>
    %cst_62 = arith.constant dense<0.000000e+00> : vector<8x128xf32>
    %124 = tpu.matmul %75, %26, %cst_62 {dimension_numbers = #tpu.dot_dimension_numbers<[1], [0], [0], [1], [0, 0, 1, 1], [], []>} : vector<8x32xf32>, vector<32x128xf32>, vector<8x128xf32> -> vector<8x128xf32>
    %125 = arith.addf %123, %124 : vector<8x128xf32>
    %126 = vector.extract_strided_slice %125 {offsets = [0, 0], sizes = [8, 32], strides = [1, 1]} : vector<8x128xf32> to vector<8x32xf32>
    %127 = arith.negf %126 : vector<8x32xf32>
    %128 = math.exp %127 : vector<8x32xf32>
    %cst_63 = arith.constant 1.000000e+00 : f32
    %129 = vector.broadcast %cst_63 : f32 to vector<8x32xf32>
    %130 = arith.addf %129, %128 : vector<8x32xf32>
    %131 = arith.divf %129, %130 : vector<8x32xf32>
    %132 = vector.extract_strided_slice %125 {offsets = [0, 32], sizes = [8, 32], strides = [1, 1]} : vector<8x128xf32> to vector<8x32xf32>
    %133 = arith.negf %132 : vector<8x32xf32>
    %134 = math.exp %133 : vector<8x32xf32>
    %cst_64 = arith.constant 1.000000e+00 : f32
    %135 = vector.broadcast %cst_64 : f32 to vector<8x32xf32>
    %136 = arith.addf %135, %134 : vector<8x32xf32>
    %137 = arith.divf %135, %136 : vector<8x32xf32>
    %138 = vector.extract_strided_slice %125 {offsets = [0, 64], sizes = [8, 32], strides = [1, 1]} : vector<8x128xf32> to vector<8x32xf32>
    %139 = math.tanh %138 : vector<8x32xf32>
    %140 = vector.extract_strided_slice %125 {offsets = [0, 96], sizes = [8, 32], strides = [1, 1]} : vector<8x128xf32> to vector<8x32xf32>
    %141 = arith.negf %140 : vector<8x32xf32>
    %142 = math.exp %141 : vector<8x32xf32>
    %cst_65 = arith.constant 1.000000e+00 : f32
    %143 = vector.broadcast %cst_65 : f32 to vector<8x32xf32>
    %144 = arith.addf %143, %142 : vector<8x32xf32>
    %145 = arith.divf %143, %144 : vector<8x32xf32>
    %146 = arith.mulf %137, %78 : vector<8x32xf32>
    %147 = arith.mulf %131, %139 : vector<8x32xf32>
    %148 = arith.addf %146, %147 : vector<8x32xf32>
    %149 = math.tanh %148 : vector<8x32xf32>
    %150 = arith.mulf %145, %149 : vector<8x32xf32>
    %151 = vector.broadcast %119 : i32 to vector<8x1xi32>
    %152 = arith.cmpi slt, %151, %29 : vector<8x1xi32>
    %153 = vector.shape_cast %152 : vector<8x1xi1> to vector<8x1xi1>
    %154 = vector.broadcast %153 : vector<8x1xi1> to vector<8x32xi1>
    %155 = arith.select %154, %150, %75 : vector<8x32xi1>, vector<8x32xf32>
    %156 = vector.shape_cast %152 : vector<8x1xi1> to vector<8x1xi1>
    %157 = vector.broadcast %156 : vector<8x1xi1> to vector<8x32xi1>
    %158 = arith.select %157, %148, %78 : vector<8x32xi1>, vector<8x32xf32>
    %c7_i32_66 = arith.constant 7 : i32
    %159 = arith.subi %c7_i32_66, %c1_i32 : i32
    %160 = arith.index_cast %159 : i32 to index
    %c0_67 = arith.constant 0 : index
    %c0_68 = arith.constant 0 : index
    %161 = vector.load %arg9[%160, %c0_67, %c0_68] : memref<8x8x128xf32, #tpu.memory_space<vmem>>, vector<1x8x128xf32>
    %162 = vector.shape_cast %161 : vector<1x8x128xf32> to vector<8x128xf32>
    %cst_69 = arith.constant dense<0.000000e+00> : vector<8x128xf32>
    %163 = tpu.matmul %114, %28, %cst_69 {dimension_numbers = #tpu.dot_dimension_numbers<[1], [0], [0], [1], [0, 0, 1, 1], [], []>} : vector<8x32xf32>, vector<32x128xf32>, vector<8x128xf32> -> vector<8x128xf32>
    %164 = arith.addf %162, %163 : vector<8x128xf32>
    %165 = vector.extract_strided_slice %164 {offsets = [0, 0], sizes = [8, 32], strides = [1, 1]} : vector<8x128xf32> to vector<8x32xf32>
    %166 = arith.negf %165 : vector<8x32xf32>
    %167 = math.exp %166 : vector<8x32xf32>
    %cst_70 = arith.constant 1.000000e+00 : f32
    %168 = vector.broadcast %cst_70 : f32 to vector<8x32xf32>
    %169 = arith.addf %168, %167 : vector<8x32xf32>
    %170 = arith.divf %168, %169 : vector<8x32xf32>
    %171 = vector.extract_strided_slice %164 {offsets = [0, 32], sizes = [8, 32], strides = [1, 1]} : vector<8x128xf32> to vector<8x32xf32>
    %172 = arith.negf %171 : vector<8x32xf32>
    %173 = math.exp %172 : vector<8x32xf32>
    %cst_71 = arith.constant 1.000000e+00 : f32
    %174 = vector.broadcast %cst_71 : f32 to vector<8x32xf32>
    %175 = arith.addf %174, %173 : vector<8x32xf32>
    %176 = arith.divf %174, %175 : vector<8x32xf32>
    %177 = vector.extract_strided_slice %164 {offsets = [0, 64], sizes = [8, 32], strides = [1, 1]} : vector<8x128xf32> to vector<8x32xf32>
    %178 = math.tanh %177 : vector<8x32xf32>
    %179 = vector.extract_strided_slice %164 {offsets = [0, 96], sizes = [8, 32], strides = [1, 1]} : vector<8x128xf32> to vector<8x32xf32>
    %180 = arith.negf %179 : vector<8x32xf32>
    %181 = math.exp %180 : vector<8x32xf32>
    %cst_72 = arith.constant 1.000000e+00 : f32
    %182 = vector.broadcast %cst_72 : f32 to vector<8x32xf32>
    %183 = arith.addf %182, %181 : vector<8x32xf32>
    %184 = arith.divf %182, %183 : vector<8x32xf32>
    %185 = arith.mulf %176, %117 : vector<8x32xf32>
    %186 = arith.mulf %170, %178 : vector<8x32xf32>
    %187 = arith.addf %185, %186 : vector<8x32xf32>
    %188 = math.tanh %187 : vector<8x32xf32>
    %189 = arith.mulf %184, %188 : vector<8x32xf32>
    %190 = vector.broadcast %120 : i32 to vector<8x1xi32>
    %191 = arith.cmpi slt, %190, %29 : vector<8x1xi32>
    %192 = vector.shape_cast %191 : vector<8x1xi1> to vector<8x1xi1>
    %193 = vector.broadcast %192 : vector<8x1xi1> to vector<8x32xi1>
    %194 = arith.select %193, %189, %114 : vector<8x32xi1>, vector<8x32xf32>
    %195 = vector.shape_cast %191 : vector<8x1xi1> to vector<8x1xi1>
    %196 = vector.broadcast %195 : vector<8x1xi1> to vector<8x32xi1>
    %197 = arith.select %196, %187, %117 : vector<8x32xi1>, vector<8x32xf32>
    %c2_i32 = arith.constant 2 : i32
    %c8_i32_73 = arith.constant 8 : i32
    %198 = arith.muli %arg0, %c8_i32_73 : i32
    %199 = arith.addi %198, %c2_i32 : i32
    %c7_i32_74 = arith.constant 7 : i32
    %200 = arith.subi %c7_i32_74, %199 : i32
    %201 = arith.index_cast %c2_i32 : i32 to index
    %c0_75 = arith.constant 0 : index
    %c0_76 = arith.constant 0 : index
    %202 = vector.load %arg8[%201, %c0_75, %c0_76] : memref<8x8x128xf32, #tpu.memory_space<vmem>>, vector<1x8x128xf32>
    %203 = vector.shape_cast %202 : vector<1x8x128xf32> to vector<8x128xf32>
    %cst_77 = arith.constant dense<0.000000e+00> : vector<8x128xf32>
    %204 = tpu.matmul %155, %26, %cst_77 {dimension_numbers = #tpu.dot_dimension_numbers<[1], [0], [0], [1], [0, 0, 1, 1], [], []>} : vector<8x32xf32>, vector<32x128xf32>, vector<8x128xf32> -> vector<8x128xf32>
    %205 = arith.addf %203, %204 : vector<8x128xf32>
    %206 = vector.extract_strided_slice %205 {offsets = [0, 0], sizes = [8, 32], strides = [1, 1]} : vector<8x128xf32> to vector<8x32xf32>
    %207 = arith.negf %206 : vector<8x32xf32>
    %208 = math.exp %207 : vector<8x32xf32>
    %cst_78 = arith.constant 1.000000e+00 : f32
    %209 = vector.broadcast %cst_78 : f32 to vector<8x32xf32>
    %210 = arith.addf %209, %208 : vector<8x32xf32>
    %211 = arith.divf %209, %210 : vector<8x32xf32>
    %212 = vector.extract_strided_slice %205 {offsets = [0, 32], sizes = [8, 32], strides = [1, 1]} : vector<8x128xf32> to vector<8x32xf32>
    %213 = arith.negf %212 : vector<8x32xf32>
    %214 = math.exp %213 : vector<8x32xf32>
    %cst_79 = arith.constant 1.000000e+00 : f32
    %215 = vector.broadcast %cst_79 : f32 to vector<8x32xf32>
    %216 = arith.addf %215, %214 : vector<8x32xf32>
    %217 = arith.divf %215, %216 : vector<8x32xf32>
    %218 = vector.extract_strided_slice %205 {offsets = [0, 64], sizes = [8, 32], strides = [1, 1]} : vector<8x128xf32> to vector<8x32xf32>
    %219 = math.tanh %218 : vector<8x32xf32>
    %220 = vector.extract_strided_slice %205 {offsets = [0, 96], sizes = [8, 32], strides = [1, 1]} : vector<8x128xf32> to vector<8x32xf32>
    %221 = arith.negf %220 : vector<8x32xf32>
    %222 = math.exp %221 : vector<8x32xf32>
    %cst_80 = arith.constant 1.000000e+00 : f32
    %223 = vector.broadcast %cst_80 : f32 to vector<8x32xf32>
    %224 = arith.addf %223, %222 : vector<8x32xf32>
    %225 = arith.divf %223, %224 : vector<8x32xf32>
    %226 = arith.mulf %217, %158 : vector<8x32xf32>
    %227 = arith.mulf %211, %219 : vector<8x32xf32>
    %228 = arith.addf %226, %227 : vector<8x32xf32>
    %229 = math.tanh %228 : vector<8x32xf32>
    %230 = arith.mulf %225, %229 : vector<8x32xf32>
    %231 = vector.broadcast %199 : i32 to vector<8x1xi32>
    %232 = arith.cmpi slt, %231, %29 : vector<8x1xi32>
    %233 = vector.shape_cast %232 : vector<8x1xi1> to vector<8x1xi1>
    %234 = vector.broadcast %233 : vector<8x1xi1> to vector<8x32xi1>
    %235 = arith.select %234, %230, %155 : vector<8x32xi1>, vector<8x32xf32>
    %236 = vector.shape_cast %232 : vector<8x1xi1> to vector<8x1xi1>
    %237 = vector.broadcast %236 : vector<8x1xi1> to vector<8x32xi1>
    %238 = arith.select %237, %228, %158 : vector<8x32xi1>, vector<8x32xf32>
    %c7_i32_81 = arith.constant 7 : i32
    %239 = arith.subi %c7_i32_81, %c2_i32 : i32
    %240 = arith.index_cast %239 : i32 to index
    %c0_82 = arith.constant 0 : index
    %c0_83 = arith.constant 0 : index
    %241 = vector.load %arg9[%240, %c0_82, %c0_83] : memref<8x8x128xf32, #tpu.memory_space<vmem>>, vector<1x8x128xf32>
    %242 = vector.shape_cast %241 : vector<1x8x128xf32> to vector<8x128xf32>
    %cst_84 = arith.constant dense<0.000000e+00> : vector<8x128xf32>
    %243 = tpu.matmul %194, %28, %cst_84 {dimension_numbers = #tpu.dot_dimension_numbers<[1], [0], [0], [1], [0, 0, 1, 1], [], []>} : vector<8x32xf32>, vector<32x128xf32>, vector<8x128xf32> -> vector<8x128xf32>
    %244 = arith.addf %242, %243 : vector<8x128xf32>
    %245 = vector.extract_strided_slice %244 {offsets = [0, 0], sizes = [8, 32], strides = [1, 1]} : vector<8x128xf32> to vector<8x32xf32>
    %246 = arith.negf %245 : vector<8x32xf32>
    %247 = math.exp %246 : vector<8x32xf32>
    %cst_85 = arith.constant 1.000000e+00 : f32
    %248 = vector.broadcast %cst_85 : f32 to vector<8x32xf32>
    %249 = arith.addf %248, %247 : vector<8x32xf32>
    %250 = arith.divf %248, %249 : vector<8x32xf32>
    %251 = vector.extract_strided_slice %244 {offsets = [0, 32], sizes = [8, 32], strides = [1, 1]} : vector<8x128xf32> to vector<8x32xf32>
    %252 = arith.negf %251 : vector<8x32xf32>
    %253 = math.exp %252 : vector<8x32xf32>
    %cst_86 = arith.constant 1.000000e+00 : f32
    %254 = vector.broadcast %cst_86 : f32 to vector<8x32xf32>
    %255 = arith.addf %254, %253 : vector<8x32xf32>
    %256 = arith.divf %254, %255 : vector<8x32xf32>
    %257 = vector.extract_strided_slice %244 {offsets = [0, 64], sizes = [8, 32], strides = [1, 1]} : vector<8x128xf32> to vector<8x32xf32>
    %258 = math.tanh %257 : vector<8x32xf32>
    %259 = vector.extract_strided_slice %244 {offsets = [0, 96], sizes = [8, 32], strides = [1, 1]} : vector<8x128xf32> to vector<8x32xf32>
    %260 = arith.negf %259 : vector<8x32xf32>
    %261 = math.exp %260 : vector<8x32xf32>
    %cst_87 = arith.constant 1.000000e+00 : f32
    %262 = vector.broadcast %cst_87 : f32 to vector<8x32xf32>
    %263 = arith.addf %262, %261 : vector<8x32xf32>
    %264 = arith.divf %262, %263 : vector<8x32xf32>
    %265 = arith.mulf %256, %197 : vector<8x32xf32>
    %266 = arith.mulf %250, %258 : vector<8x32xf32>
    %267 = arith.addf %265, %266 : vector<8x32xf32>
    %268 = math.tanh %267 : vector<8x32xf32>
    %269 = arith.mulf %264, %268 : vector<8x32xf32>
    %270 = vector.broadcast %200 : i32 to vector<8x1xi32>
    %271 = arith.cmpi slt, %270, %29 : vector<8x1xi32>
    %272 = vector.shape_cast %271 : vector<8x1xi1> to vector<8x1xi1>
    %273 = vector.broadcast %272 : vector<8x1xi1> to vector<8x32xi1>
    %274 = arith.select %273, %269, %194 : vector<8x32xi1>, vector<8x32xf32>
    %275 = vector.shape_cast %271 : vector<8x1xi1> to vector<8x1xi1>
    %276 = vector.broadcast %275 : vector<8x1xi1> to vector<8x32xi1>
    %277 = arith.select %276, %267, %197 : vector<8x32xi1>, vector<8x32xf32>
    %c3_i32 = arith.constant 3 : i32
    %c8_i32_88 = arith.constant 8 : i32
    %278 = arith.muli %arg0, %c8_i32_88 : i32
    %279 = arith.addi %278, %c3_i32 : i32
    %c7_i32_89 = arith.constant 7 : i32
    %280 = arith.subi %c7_i32_89, %279 : i32
    %281 = arith.index_cast %c3_i32 : i32 to index
    %c0_90 = arith.constant 0 : index
    %c0_91 = arith.constant 0 : index
    %282 = vector.load %arg8[%281, %c0_90, %c0_91] : memref<8x8x128xf32, #tpu.memory_space<vmem>>, vector<1x8x128xf32>
    %283 = vector.shape_cast %282 : vector<1x8x128xf32> to vector<8x128xf32>
    %cst_92 = arith.constant dense<0.000000e+00> : vector<8x128xf32>
    %284 = tpu.matmul %235, %26, %cst_92 {dimension_numbers = #tpu.dot_dimension_numbers<[1], [0], [0], [1], [0, 0, 1, 1], [], []>} : vector<8x32xf32>, vector<32x128xf32>, vector<8x128xf32> -> vector<8x128xf32>
    %285 = arith.addf %283, %284 : vector<8x128xf32>
    %286 = vector.extract_strided_slice %285 {offsets = [0, 0], sizes = [8, 32], strides = [1, 1]} : vector<8x128xf32> to vector<8x32xf32>
    %287 = arith.negf %286 : vector<8x32xf32>
    %288 = math.exp %287 : vector<8x32xf32>
    %cst_93 = arith.constant 1.000000e+00 : f32
    %289 = vector.broadcast %cst_93 : f32 to vector<8x32xf32>
    %290 = arith.addf %289, %288 : vector<8x32xf32>
    %291 = arith.divf %289, %290 : vector<8x32xf32>
    %292 = vector.extract_strided_slice %285 {offsets = [0, 32], sizes = [8, 32], strides = [1, 1]} : vector<8x128xf32> to vector<8x32xf32>
    %293 = arith.negf %292 : vector<8x32xf32>
    %294 = math.exp %293 : vector<8x32xf32>
    %cst_94 = arith.constant 1.000000e+00 : f32
    %295 = vector.broadcast %cst_94 : f32 to vector<8x32xf32>
    %296 = arith.addf %295, %294 : vector<8x32xf32>
    %297 = arith.divf %295, %296 : vector<8x32xf32>
    %298 = vector.extract_strided_slice %285 {offsets = [0, 64], sizes = [8, 32], strides = [1, 1]} : vector<8x128xf32> to vector<8x32xf32>
    %299 = math.tanh %298 : vector<8x32xf32>
    %300 = vector.extract_strided_slice %285 {offsets = [0, 96], sizes = [8, 32], strides = [1, 1]} : vector<8x128xf32> to vector<8x32xf32>
    %301 = arith.negf %300 : vector<8x32xf32>
    %302 = math.exp %301 : vector<8x32xf32>
    %cst_95 = arith.constant 1.000000e+00 : f32
    %303 = vector.broadcast %cst_95 : f32 to vector<8x32xf32>
    %304 = arith.addf %303, %302 : vector<8x32xf32>
    %305 = arith.divf %303, %304 : vector<8x32xf32>
    %306 = arith.mulf %297, %238 : vector<8x32xf32>
    %307 = arith.mulf %291, %299 : vector<8x32xf32>
    %308 = arith.addf %306, %307 : vector<8x32xf32>
    %309 = math.tanh %308 : vector<8x32xf32>
    %310 = arith.mulf %305, %309 : vector<8x32xf32>
    %311 = vector.broadcast %279 : i32 to vector<8x1xi32>
    %312 = arith.cmpi slt, %311, %29 : vector<8x1xi32>
    %313 = vector.shape_cast %312 : vector<8x1xi1> to vector<8x1xi1>
    %314 = vector.broadcast %313 : vector<8x1xi1> to vector<8x32xi1>
    %315 = arith.select %314, %310, %235 : vector<8x32xi1>, vector<8x32xf32>
    %316 = vector.shape_cast %312 : vector<8x1xi1> to vector<8x1xi1>
    %317 = vector.broadcast %316 : vector<8x1xi1> to vector<8x32xi1>
    %318 = arith.select %317, %308, %238 : vector<8x32xi1>, vector<8x32xf32>
    %c7_i32_96 = arith.constant 7 : i32
    %319 = arith.subi %c7_i32_96, %c3_i32 : i32
    %320 = arith.index_cast %319 : i32 to index
    %c0_97 = arith.constant 0 : index
    %c0_98 = arith.constant 0 : index
    %321 = vector.load %arg9[%320, %c0_97, %c0_98] : memref<8x8x128xf32, #tpu.memory_space<vmem>>, vector<1x8x128xf32>
    %322 = vector.shape_cast %321 : vector<1x8x128xf32> to vector<8x128xf32>
    %cst_99 = arith.constant dense<0.000000e+00> : vector<8x128xf32>
    %323 = tpu.matmul %274, %28, %cst_99 {dimension_numbers = #tpu.dot_dimension_numbers<[1], [0], [0], [1], [0, 0, 1, 1], [], []>} : vector<8x32xf32>, vector<32x128xf32>, vector<8x128xf32> -> vector<8x128xf32>
    %324 = arith.addf %322, %323 : vector<8x128xf32>
    %325 = vector.extract_strided_slice %324 {offsets = [0, 0], sizes = [8, 32], strides = [1, 1]} : vector<8x128xf32> to vector<8x32xf32>
    %326 = arith.negf %325 : vector<8x32xf32>
    %327 = math.exp %326 : vector<8x32xf32>
    %cst_100 = arith.constant 1.000000e+00 : f32
    %328 = vector.broadcast %cst_100 : f32 to vector<8x32xf32>
    %329 = arith.addf %328, %327 : vector<8x32xf32>
    %330 = arith.divf %328, %329 : vector<8x32xf32>
    %331 = vector.extract_strided_slice %324 {offsets = [0, 32], sizes = [8, 32], strides = [1, 1]} : vector<8x128xf32> to vector<8x32xf32>
    %332 = arith.negf %331 : vector<8x32xf32>
    %333 = math.exp %332 : vector<8x32xf32>
    %cst_101 = arith.constant 1.000000e+00 : f32
    %334 = vector.broadcast %cst_101 : f32 to vector<8x32xf32>
    %335 = arith.addf %334, %333 : vector<8x32xf32>
    %336 = arith.divf %334, %335 : vector<8x32xf32>
    %337 = vector.extract_strided_slice %324 {offsets = [0, 64], sizes = [8, 32], strides = [1, 1]} : vector<8x128xf32> to vector<8x32xf32>
    %338 = math.tanh %337 : vector<8x32xf32>
    %339 = vector.extract_strided_slice %324 {offsets = [0, 96], sizes = [8, 32], strides = [1, 1]} : vector<8x128xf32> to vector<8x32xf32>
    %340 = arith.negf %339 : vector<8x32xf32>
    %341 = math.exp %340 : vector<8x32xf32>
    %cst_102 = arith.constant 1.000000e+00 : f32
    %342 = vector.broadcast %cst_102 : f32 to vector<8x32xf32>
    %343 = arith.addf %342, %341 : vector<8x32xf32>
    %344 = arith.divf %342, %343 : vector<8x32xf32>
    %345 = arith.mulf %336, %277 : vector<8x32xf32>
    %346 = arith.mulf %330, %338 : vector<8x32xf32>
    %347 = arith.addf %345, %346 : vector<8x32xf32>
    %348 = math.tanh %347 : vector<8x32xf32>
    %349 = arith.mulf %344, %348 : vector<8x32xf32>
    %350 = vector.broadcast %280 : i32 to vector<8x1xi32>
    %351 = arith.cmpi slt, %350, %29 : vector<8x1xi32>
    %352 = vector.shape_cast %351 : vector<8x1xi1> to vector<8x1xi1>
    %353 = vector.broadcast %352 : vector<8x1xi1> to vector<8x32xi1>
    %354 = arith.select %353, %349, %274 : vector<8x32xi1>, vector<8x32xf32>
    %355 = vector.shape_cast %351 : vector<8x1xi1> to vector<8x1xi1>
    %356 = vector.broadcast %355 : vector<8x1xi1> to vector<8x32xi1>
    %357 = arith.select %356, %347, %277 : vector<8x32xi1>, vector<8x32xf32>
    %c4_i32 = arith.constant 4 : i32
    %c8_i32_103 = arith.constant 8 : i32
    %358 = arith.muli %arg0, %c8_i32_103 : i32
    %359 = arith.addi %358, %c4_i32 : i32
    %c7_i32_104 = arith.constant 7 : i32
    %360 = arith.subi %c7_i32_104, %359 : i32
    %361 = arith.index_cast %c4_i32 : i32 to index
    %c0_105 = arith.constant 0 : index
    %c0_106 = arith.constant 0 : index
    %362 = vector.load %arg8[%361, %c0_105, %c0_106] : memref<8x8x128xf32, #tpu.memory_space<vmem>>, vector<1x8x128xf32>
    %363 = vector.shape_cast %362 : vector<1x8x128xf32> to vector<8x128xf32>
    %cst_107 = arith.constant dense<0.000000e+00> : vector<8x128xf32>
    %364 = tpu.matmul %315, %26, %cst_107 {dimension_numbers = #tpu.dot_dimension_numbers<[1], [0], [0], [1], [0, 0, 1, 1], [], []>} : vector<8x32xf32>, vector<32x128xf32>, vector<8x128xf32> -> vector<8x128xf32>
    %365 = arith.addf %363, %364 : vector<8x128xf32>
    %366 = vector.extract_strided_slice %365 {offsets = [0, 0], sizes = [8, 32], strides = [1, 1]} : vector<8x128xf32> to vector<8x32xf32>
    %367 = arith.negf %366 : vector<8x32xf32>
    %368 = math.exp %367 : vector<8x32xf32>
    %cst_108 = arith.constant 1.000000e+00 : f32
    %369 = vector.broadcast %cst_108 : f32 to vector<8x32xf32>
    %370 = arith.addf %369, %368 : vector<8x32xf32>
    %371 = arith.divf %369, %370 : vector<8x32xf32>
    %372 = vector.extract_strided_slice %365 {offsets = [0, 32], sizes = [8, 32], strides = [1, 1]} : vector<8x128xf32> to vector<8x32xf32>
    %373 = arith.negf %372 : vector<8x32xf32>
    %374 = math.exp %373 : vector<8x32xf32>
    %cst_109 = arith.constant 1.000000e+00 : f32
    %375 = vector.broadcast %cst_109 : f32 to vector<8x32xf32>
    %376 = arith.addf %375, %374 : vector<8x32xf32>
    %377 = arith.divf %375, %376 : vector<8x32xf32>
    %378 = vector.extract_strided_slice %365 {offsets = [0, 64], sizes = [8, 32], strides = [1, 1]} : vector<8x128xf32> to vector<8x32xf32>
    %379 = math.tanh %378 : vector<8x32xf32>
    %380 = vector.extract_strided_slice %365 {offsets = [0, 96], sizes = [8, 32], strides = [1, 1]} : vector<8x128xf32> to vector<8x32xf32>
    %381 = arith.negf %380 : vector<8x32xf32>
    %382 = math.exp %381 : vector<8x32xf32>
    %cst_110 = arith.constant 1.000000e+00 : f32
    %383 = vector.broadcast %cst_110 : f32 to vector<8x32xf32>
    %384 = arith.addf %383, %382 : vector<8x32xf32>
    %385 = arith.divf %383, %384 : vector<8x32xf32>
    %386 = arith.mulf %377, %318 : vector<8x32xf32>
    %387 = arith.mulf %371, %379 : vector<8x32xf32>
    %388 = arith.addf %386, %387 : vector<8x32xf32>
    %389 = math.tanh %388 : vector<8x32xf32>
    %390 = arith.mulf %385, %389 : vector<8x32xf32>
    %391 = vector.broadcast %359 : i32 to vector<8x1xi32>
    %392 = arith.cmpi slt, %391, %29 : vector<8x1xi32>
    %393 = vector.shape_cast %392 : vector<8x1xi1> to vector<8x1xi1>
    %394 = vector.broadcast %393 : vector<8x1xi1> to vector<8x32xi1>
    %395 = arith.select %394, %390, %315 : vector<8x32xi1>, vector<8x32xf32>
    %396 = vector.shape_cast %392 : vector<8x1xi1> to vector<8x1xi1>
    %397 = vector.broadcast %396 : vector<8x1xi1> to vector<8x32xi1>
    %398 = arith.select %397, %388, %318 : vector<8x32xi1>, vector<8x32xf32>
    %c7_i32_111 = arith.constant 7 : i32
    %399 = arith.subi %c7_i32_111, %c4_i32 : i32
    %400 = arith.index_cast %399 : i32 to index
    %c0_112 = arith.constant 0 : index
    %c0_113 = arith.constant 0 : index
    %401 = vector.load %arg9[%400, %c0_112, %c0_113] : memref<8x8x128xf32, #tpu.memory_space<vmem>>, vector<1x8x128xf32>
    %402 = vector.shape_cast %401 : vector<1x8x128xf32> to vector<8x128xf32>
    %cst_114 = arith.constant dense<0.000000e+00> : vector<8x128xf32>
    %403 = tpu.matmul %354, %28, %cst_114 {dimension_numbers = #tpu.dot_dimension_numbers<[1], [0], [0], [1], [0, 0, 1, 1], [], []>} : vector<8x32xf32>, vector<32x128xf32>, vector<8x128xf32> -> vector<8x128xf32>
    %404 = arith.addf %402, %403 : vector<8x128xf32>
    %405 = vector.extract_strided_slice %404 {offsets = [0, 0], sizes = [8, 32], strides = [1, 1]} : vector<8x128xf32> to vector<8x32xf32>
    %406 = arith.negf %405 : vector<8x32xf32>
    %407 = math.exp %406 : vector<8x32xf32>
    %cst_115 = arith.constant 1.000000e+00 : f32
    %408 = vector.broadcast %cst_115 : f32 to vector<8x32xf32>
    %409 = arith.addf %408, %407 : vector<8x32xf32>
    %410 = arith.divf %408, %409 : vector<8x32xf32>
    %411 = vector.extract_strided_slice %404 {offsets = [0, 32], sizes = [8, 32], strides = [1, 1]} : vector<8x128xf32> to vector<8x32xf32>
    %412 = arith.negf %411 : vector<8x32xf32>
    %413 = math.exp %412 : vector<8x32xf32>
    %cst_116 = arith.constant 1.000000e+00 : f32
    %414 = vector.broadcast %cst_116 : f32 to vector<8x32xf32>
    %415 = arith.addf %414, %413 : vector<8x32xf32>
    %416 = arith.divf %414, %415 : vector<8x32xf32>
    %417 = vector.extract_strided_slice %404 {offsets = [0, 64], sizes = [8, 32], strides = [1, 1]} : vector<8x128xf32> to vector<8x32xf32>
    %418 = math.tanh %417 : vector<8x32xf32>
    %419 = vector.extract_strided_slice %404 {offsets = [0, 96], sizes = [8, 32], strides = [1, 1]} : vector<8x128xf32> to vector<8x32xf32>
    %420 = arith.negf %419 : vector<8x32xf32>
    %421 = math.exp %420 : vector<8x32xf32>
    %cst_117 = arith.constant 1.000000e+00 : f32
    %422 = vector.broadcast %cst_117 : f32 to vector<8x32xf32>
    %423 = arith.addf %422, %421 : vector<8x32xf32>
    %424 = arith.divf %422, %423 : vector<8x32xf32>
    %425 = arith.mulf %416, %357 : vector<8x32xf32>
    %426 = arith.mulf %410, %418 : vector<8x32xf32>
    %427 = arith.addf %425, %426 : vector<8x32xf32>
    %428 = math.tanh %427 : vector<8x32xf32>
    %429 = arith.mulf %424, %428 : vector<8x32xf32>
    %430 = vector.broadcast %360 : i32 to vector<8x1xi32>
    %431 = arith.cmpi slt, %430, %29 : vector<8x1xi32>
    %432 = vector.shape_cast %431 : vector<8x1xi1> to vector<8x1xi1>
    %433 = vector.broadcast %432 : vector<8x1xi1> to vector<8x32xi1>
    %434 = arith.select %433, %429, %354 : vector<8x32xi1>, vector<8x32xf32>
    %435 = vector.shape_cast %431 : vector<8x1xi1> to vector<8x1xi1>
    %436 = vector.broadcast %435 : vector<8x1xi1> to vector<8x32xi1>
    %437 = arith.select %436, %427, %357 : vector<8x32xi1>, vector<8x32xf32>
    %c5_i32 = arith.constant 5 : i32
    %c8_i32_118 = arith.constant 8 : i32
    %438 = arith.muli %arg0, %c8_i32_118 : i32
    %439 = arith.addi %438, %c5_i32 : i32
    %c7_i32_119 = arith.constant 7 : i32
    %440 = arith.subi %c7_i32_119, %439 : i32
    %441 = arith.index_cast %c5_i32 : i32 to index
    %c0_120 = arith.constant 0 : index
    %c0_121 = arith.constant 0 : index
    %442 = vector.load %arg8[%441, %c0_120, %c0_121] : memref<8x8x128xf32, #tpu.memory_space<vmem>>, vector<1x8x128xf32>
    %443 = vector.shape_cast %442 : vector<1x8x128xf32> to vector<8x128xf32>
    %cst_122 = arith.constant dense<0.000000e+00> : vector<8x128xf32>
    %444 = tpu.matmul %395, %26, %cst_122 {dimension_numbers = #tpu.dot_dimension_numbers<[1], [0], [0], [1], [0, 0, 1, 1], [], []>} : vector<8x32xf32>, vector<32x128xf32>, vector<8x128xf32> -> vector<8x128xf32>
    %445 = arith.addf %443, %444 : vector<8x128xf32>
    %446 = vector.extract_strided_slice %445 {offsets = [0, 0], sizes = [8, 32], strides = [1, 1]} : vector<8x128xf32> to vector<8x32xf32>
    %447 = arith.negf %446 : vector<8x32xf32>
    %448 = math.exp %447 : vector<8x32xf32>
    %cst_123 = arith.constant 1.000000e+00 : f32
    %449 = vector.broadcast %cst_123 : f32 to vector<8x32xf32>
    %450 = arith.addf %449, %448 : vector<8x32xf32>
    %451 = arith.divf %449, %450 : vector<8x32xf32>
    %452 = vector.extract_strided_slice %445 {offsets = [0, 32], sizes = [8, 32], strides = [1, 1]} : vector<8x128xf32> to vector<8x32xf32>
    %453 = arith.negf %452 : vector<8x32xf32>
    %454 = math.exp %453 : vector<8x32xf32>
    %cst_124 = arith.constant 1.000000e+00 : f32
    %455 = vector.broadcast %cst_124 : f32 to vector<8x32xf32>
    %456 = arith.addf %455, %454 : vector<8x32xf32>
    %457 = arith.divf %455, %456 : vector<8x32xf32>
    %458 = vector.extract_strided_slice %445 {offsets = [0, 64], sizes = [8, 32], strides = [1, 1]} : vector<8x128xf32> to vector<8x32xf32>
    %459 = math.tanh %458 : vector<8x32xf32>
    %460 = vector.extract_strided_slice %445 {offsets = [0, 96], sizes = [8, 32], strides = [1, 1]} : vector<8x128xf32> to vector<8x32xf32>
    %461 = arith.negf %460 : vector<8x32xf32>
    %462 = math.exp %461 : vector<8x32xf32>
    %cst_125 = arith.constant 1.000000e+00 : f32
    %463 = vector.broadcast %cst_125 : f32 to vector<8x32xf32>
    %464 = arith.addf %463, %462 : vector<8x32xf32>
    %465 = arith.divf %463, %464 : vector<8x32xf32>
    %466 = arith.mulf %457, %398 : vector<8x32xf32>
    %467 = arith.mulf %451, %459 : vector<8x32xf32>
    %468 = arith.addf %466, %467 : vector<8x32xf32>
    %469 = math.tanh %468 : vector<8x32xf32>
    %470 = arith.mulf %465, %469 : vector<8x32xf32>
    %471 = vector.broadcast %439 : i32 to vector<8x1xi32>
    %472 = arith.cmpi slt, %471, %29 : vector<8x1xi32>
    %473 = vector.shape_cast %472 : vector<8x1xi1> to vector<8x1xi1>
    %474 = vector.broadcast %473 : vector<8x1xi1> to vector<8x32xi1>
    %475 = arith.select %474, %470, %395 : vector<8x32xi1>, vector<8x32xf32>
    %476 = vector.shape_cast %472 : vector<8x1xi1> to vector<8x1xi1>
    %477 = vector.broadcast %476 : vector<8x1xi1> to vector<8x32xi1>
    %478 = arith.select %477, %468, %398 : vector<8x32xi1>, vector<8x32xf32>
    %c7_i32_126 = arith.constant 7 : i32
    %479 = arith.subi %c7_i32_126, %c5_i32 : i32
    %480 = arith.index_cast %479 : i32 to index
    %c0_127 = arith.constant 0 : index
    %c0_128 = arith.constant 0 : index
    %481 = vector.load %arg9[%480, %c0_127, %c0_128] : memref<8x8x128xf32, #tpu.memory_space<vmem>>, vector<1x8x128xf32>
    %482 = vector.shape_cast %481 : vector<1x8x128xf32> to vector<8x128xf32>
    %cst_129 = arith.constant dense<0.000000e+00> : vector<8x128xf32>
    %483 = tpu.matmul %434, %28, %cst_129 {dimension_numbers = #tpu.dot_dimension_numbers<[1], [0], [0], [1], [0, 0, 1, 1], [], []>} : vector<8x32xf32>, vector<32x128xf32>, vector<8x128xf32> -> vector<8x128xf32>
    %484 = arith.addf %482, %483 : vector<8x128xf32>
    %485 = vector.extract_strided_slice %484 {offsets = [0, 0], sizes = [8, 32], strides = [1, 1]} : vector<8x128xf32> to vector<8x32xf32>
    %486 = arith.negf %485 : vector<8x32xf32>
    %487 = math.exp %486 : vector<8x32xf32>
    %cst_130 = arith.constant 1.000000e+00 : f32
    %488 = vector.broadcast %cst_130 : f32 to vector<8x32xf32>
    %489 = arith.addf %488, %487 : vector<8x32xf32>
    %490 = arith.divf %488, %489 : vector<8x32xf32>
    %491 = vector.extract_strided_slice %484 {offsets = [0, 32], sizes = [8, 32], strides = [1, 1]} : vector<8x128xf32> to vector<8x32xf32>
    %492 = arith.negf %491 : vector<8x32xf32>
    %493 = math.exp %492 : vector<8x32xf32>
    %cst_131 = arith.constant 1.000000e+00 : f32
    %494 = vector.broadcast %cst_131 : f32 to vector<8x32xf32>
    %495 = arith.addf %494, %493 : vector<8x32xf32>
    %496 = arith.divf %494, %495 : vector<8x32xf32>
    %497 = vector.extract_strided_slice %484 {offsets = [0, 64], sizes = [8, 32], strides = [1, 1]} : vector<8x128xf32> to vector<8x32xf32>
    %498 = math.tanh %497 : vector<8x32xf32>
    %499 = vector.extract_strided_slice %484 {offsets = [0, 96], sizes = [8, 32], strides = [1, 1]} : vector<8x128xf32> to vector<8x32xf32>
    %500 = arith.negf %499 : vector<8x32xf32>
    %501 = math.exp %500 : vector<8x32xf32>
    %cst_132 = arith.constant 1.000000e+00 : f32
    %502 = vector.broadcast %cst_132 : f32 to vector<8x32xf32>
    %503 = arith.addf %502, %501 : vector<8x32xf32>
    %504 = arith.divf %502, %503 : vector<8x32xf32>
    %505 = arith.mulf %496, %437 : vector<8x32xf32>
    %506 = arith.mulf %490, %498 : vector<8x32xf32>
    %507 = arith.addf %505, %506 : vector<8x32xf32>
    %508 = math.tanh %507 : vector<8x32xf32>
    %509 = arith.mulf %504, %508 : vector<8x32xf32>
    %510 = vector.broadcast %440 : i32 to vector<8x1xi32>
    %511 = arith.cmpi slt, %510, %29 : vector<8x1xi32>
    %512 = vector.shape_cast %511 : vector<8x1xi1> to vector<8x1xi1>
    %513 = vector.broadcast %512 : vector<8x1xi1> to vector<8x32xi1>
    %514 = arith.select %513, %509, %434 : vector<8x32xi1>, vector<8x32xf32>
    %515 = vector.shape_cast %511 : vector<8x1xi1> to vector<8x1xi1>
    %516 = vector.broadcast %515 : vector<8x1xi1> to vector<8x32xi1>
    %517 = arith.select %516, %507, %437 : vector<8x32xi1>, vector<8x32xf32>
    %c6_i32 = arith.constant 6 : i32
    %c8_i32_133 = arith.constant 8 : i32
    %518 = arith.muli %arg0, %c8_i32_133 : i32
    %519 = arith.addi %518, %c6_i32 : i32
    %c7_i32_134 = arith.constant 7 : i32
    %520 = arith.subi %c7_i32_134, %519 : i32
    %521 = arith.index_cast %c6_i32 : i32 to index
    %c0_135 = arith.constant 0 : index
    %c0_136 = arith.constant 0 : index
    %522 = vector.load %arg8[%521, %c0_135, %c0_136] : memref<8x8x128xf32, #tpu.memory_space<vmem>>, vector<1x8x128xf32>
    %523 = vector.shape_cast %522 : vector<1x8x128xf32> to vector<8x128xf32>
    %cst_137 = arith.constant dense<0.000000e+00> : vector<8x128xf32>
    %524 = tpu.matmul %475, %26, %cst_137 {dimension_numbers = #tpu.dot_dimension_numbers<[1], [0], [0], [1], [0, 0, 1, 1], [], []>} : vector<8x32xf32>, vector<32x128xf32>, vector<8x128xf32> -> vector<8x128xf32>
    %525 = arith.addf %523, %524 : vector<8x128xf32>
    %526 = vector.extract_strided_slice %525 {offsets = [0, 0], sizes = [8, 32], strides = [1, 1]} : vector<8x128xf32> to vector<8x32xf32>
    %527 = arith.negf %526 : vector<8x32xf32>
    %528 = math.exp %527 : vector<8x32xf32>
    %cst_138 = arith.constant 1.000000e+00 : f32
    %529 = vector.broadcast %cst_138 : f32 to vector<8x32xf32>
    %530 = arith.addf %529, %528 : vector<8x32xf32>
    %531 = arith.divf %529, %530 : vector<8x32xf32>
    %532 = vector.extract_strided_slice %525 {offsets = [0, 32], sizes = [8, 32], strides = [1, 1]} : vector<8x128xf32> to vector<8x32xf32>
    %533 = arith.negf %532 : vector<8x32xf32>
    %534 = math.exp %533 : vector<8x32xf32>
    %cst_139 = arith.constant 1.000000e+00 : f32
    %535 = vector.broadcast %cst_139 : f32 to vector<8x32xf32>
    %536 = arith.addf %535, %534 : vector<8x32xf32>
    %537 = arith.divf %535, %536 : vector<8x32xf32>
    %538 = vector.extract_strided_slice %525 {offsets = [0, 64], sizes = [8, 32], strides = [1, 1]} : vector<8x128xf32> to vector<8x32xf32>
    %539 = math.tanh %538 : vector<8x32xf32>
    %540 = vector.extract_strided_slice %525 {offsets = [0, 96], sizes = [8, 32], strides = [1, 1]} : vector<8x128xf32> to vector<8x32xf32>
    %541 = arith.negf %540 : vector<8x32xf32>
    %542 = math.exp %541 : vector<8x32xf32>
    %cst_140 = arith.constant 1.000000e+00 : f32
    %543 = vector.broadcast %cst_140 : f32 to vector<8x32xf32>
    %544 = arith.addf %543, %542 : vector<8x32xf32>
    %545 = arith.divf %543, %544 : vector<8x32xf32>
    %546 = arith.mulf %537, %478 : vector<8x32xf32>
    %547 = arith.mulf %531, %539 : vector<8x32xf32>
    %548 = arith.addf %546, %547 : vector<8x32xf32>
    %549 = math.tanh %548 : vector<8x32xf32>
    %550 = arith.mulf %545, %549 : vector<8x32xf32>
    %551 = vector.broadcast %519 : i32 to vector<8x1xi32>
    %552 = arith.cmpi slt, %551, %29 : vector<8x1xi32>
    %553 = vector.shape_cast %552 : vector<8x1xi1> to vector<8x1xi1>
    %554 = vector.broadcast %553 : vector<8x1xi1> to vector<8x32xi1>
    %555 = arith.select %554, %550, %475 : vector<8x32xi1>, vector<8x32xf32>
    %556 = vector.shape_cast %552 : vector<8x1xi1> to vector<8x1xi1>
    %557 = vector.broadcast %556 : vector<8x1xi1> to vector<8x32xi1>
    %558 = arith.select %557, %548, %478 : vector<8x32xi1>, vector<8x32xf32>
    %c7_i32_141 = arith.constant 7 : i32
    %559 = arith.subi %c7_i32_141, %c6_i32 : i32
    %560 = arith.index_cast %559 : i32 to index
    %c0_142 = arith.constant 0 : index
    %c0_143 = arith.constant 0 : index
    %561 = vector.load %arg9[%560, %c0_142, %c0_143] : memref<8x8x128xf32, #tpu.memory_space<vmem>>, vector<1x8x128xf32>
    %562 = vector.shape_cast %561 : vector<1x8x128xf32> to vector<8x128xf32>
    %cst_144 = arith.constant dense<0.000000e+00> : vector<8x128xf32>
    %563 = tpu.matmul %514, %28, %cst_144 {dimension_numbers = #tpu.dot_dimension_numbers<[1], [0], [0], [1], [0, 0, 1, 1], [], []>} : vector<8x32xf32>, vector<32x128xf32>, vector<8x128xf32> -> vector<8x128xf32>
    %564 = arith.addf %562, %563 : vector<8x128xf32>
    %565 = vector.extract_strided_slice %564 {offsets = [0, 0], sizes = [8, 32], strides = [1, 1]} : vector<8x128xf32> to vector<8x32xf32>
    %566 = arith.negf %565 : vector<8x32xf32>
    %567 = math.exp %566 : vector<8x32xf32>
    %cst_145 = arith.constant 1.000000e+00 : f32
    %568 = vector.broadcast %cst_145 : f32 to vector<8x32xf32>
    %569 = arith.addf %568, %567 : vector<8x32xf32>
    %570 = arith.divf %568, %569 : vector<8x32xf32>
    %571 = vector.extract_strided_slice %564 {offsets = [0, 32], sizes = [8, 32], strides = [1, 1]} : vector<8x128xf32> to vector<8x32xf32>
    %572 = arith.negf %571 : vector<8x32xf32>
    %573 = math.exp %572 : vector<8x32xf32>
    %cst_146 = arith.constant 1.000000e+00 : f32
    %574 = vector.broadcast %cst_146 : f32 to vector<8x32xf32>
    %575 = arith.addf %574, %573 : vector<8x32xf32>
    %576 = arith.divf %574, %575 : vector<8x32xf32>
    %577 = vector.extract_strided_slice %564 {offsets = [0, 64], sizes = [8, 32], strides = [1, 1]} : vector<8x128xf32> to vector<8x32xf32>
    %578 = math.tanh %577 : vector<8x32xf32>
    %579 = vector.extract_strided_slice %564 {offsets = [0, 96], sizes = [8, 32], strides = [1, 1]} : vector<8x128xf32> to vector<8x32xf32>
    %580 = arith.negf %579 : vector<8x32xf32>
    %581 = math.exp %580 : vector<8x32xf32>
    %cst_147 = arith.constant 1.000000e+00 : f32
    %582 = vector.broadcast %cst_147 : f32 to vector<8x32xf32>
    %583 = arith.addf %582, %581 : vector<8x32xf32>
    %584 = arith.divf %582, %583 : vector<8x32xf32>
    %585 = arith.mulf %576, %517 : vector<8x32xf32>
    %586 = arith.mulf %570, %578 : vector<8x32xf32>
    %587 = arith.addf %585, %586 : vector<8x32xf32>
    %588 = math.tanh %587 : vector<8x32xf32>
    %589 = arith.mulf %584, %588 : vector<8x32xf32>
    %590 = vector.broadcast %520 : i32 to vector<8x1xi32>
    %591 = arith.cmpi slt, %590, %29 : vector<8x1xi32>
    %592 = vector.shape_cast %591 : vector<8x1xi1> to vector<8x1xi1>
    %593 = vector.broadcast %592 : vector<8x1xi1> to vector<8x32xi1>
    %594 = arith.select %593, %589, %514 : vector<8x32xi1>, vector<8x32xf32>
    %595 = vector.shape_cast %591 : vector<8x1xi1> to vector<8x1xi1>
    %596 = vector.broadcast %595 : vector<8x1xi1> to vector<8x32xi1>
    %597 = arith.select %596, %587, %517 : vector<8x32xi1>, vector<8x32xf32>
    %c7_i32_148 = arith.constant 7 : i32
    %c8_i32_149 = arith.constant 8 : i32
    %598 = arith.muli %arg0, %c8_i32_149 : i32
    %599 = arith.addi %598, %c7_i32_148 : i32
    %c7_i32_150 = arith.constant 7 : i32
    %600 = arith.subi %c7_i32_150, %599 : i32
    %601 = arith.index_cast %c7_i32_148 : i32 to index
    %c0_151 = arith.constant 0 : index
    %c0_152 = arith.constant 0 : index
    %602 = vector.load %arg8[%601, %c0_151, %c0_152] : memref<8x8x128xf32, #tpu.memory_space<vmem>>, vector<1x8x128xf32>
    %603 = vector.shape_cast %602 : vector<1x8x128xf32> to vector<8x128xf32>
    %cst_153 = arith.constant dense<0.000000e+00> : vector<8x128xf32>
    %604 = tpu.matmul %555, %26, %cst_153 {dimension_numbers = #tpu.dot_dimension_numbers<[1], [0], [0], [1], [0, 0, 1, 1], [], []>} : vector<8x32xf32>, vector<32x128xf32>, vector<8x128xf32> -> vector<8x128xf32>
    %605 = arith.addf %603, %604 : vector<8x128xf32>
    %606 = vector.extract_strided_slice %605 {offsets = [0, 0], sizes = [8, 32], strides = [1, 1]} : vector<8x128xf32> to vector<8x32xf32>
    %607 = arith.negf %606 : vector<8x32xf32>
    %608 = math.exp %607 : vector<8x32xf32>
    %cst_154 = arith.constant 1.000000e+00 : f32
    %609 = vector.broadcast %cst_154 : f32 to vector<8x32xf32>
    %610 = arith.addf %609, %608 : vector<8x32xf32>
    %611 = arith.divf %609, %610 : vector<8x32xf32>
    %612 = vector.extract_strided_slice %605 {offsets = [0, 32], sizes = [8, 32], strides = [1, 1]} : vector<8x128xf32> to vector<8x32xf32>
    %613 = arith.negf %612 : vector<8x32xf32>
    %614 = math.exp %613 : vector<8x32xf32>
    %cst_155 = arith.constant 1.000000e+00 : f32
    %615 = vector.broadcast %cst_155 : f32 to vector<8x32xf32>
    %616 = arith.addf %615, %614 : vector<8x32xf32>
    %617 = arith.divf %615, %616 : vector<8x32xf32>
    %618 = vector.extract_strided_slice %605 {offsets = [0, 64], sizes = [8, 32], strides = [1, 1]} : vector<8x128xf32> to vector<8x32xf32>
    %619 = math.tanh %618 : vector<8x32xf32>
    %620 = vector.extract_strided_slice %605 {offsets = [0, 96], sizes = [8, 32], strides = [1, 1]} : vector<8x128xf32> to vector<8x32xf32>
    %621 = arith.negf %620 : vector<8x32xf32>
    %622 = math.exp %621 : vector<8x32xf32>
    %cst_156 = arith.constant 1.000000e+00 : f32
    %623 = vector.broadcast %cst_156 : f32 to vector<8x32xf32>
    %624 = arith.addf %623, %622 : vector<8x32xf32>
    %625 = arith.divf %623, %624 : vector<8x32xf32>
    %626 = arith.mulf %617, %558 : vector<8x32xf32>
    %627 = arith.mulf %611, %619 : vector<8x32xf32>
    %628 = arith.addf %626, %627 : vector<8x32xf32>
    %629 = math.tanh %628 : vector<8x32xf32>
    %630 = arith.mulf %625, %629 : vector<8x32xf32>
    %631 = vector.broadcast %599 : i32 to vector<8x1xi32>
    %632 = arith.cmpi slt, %631, %29 : vector<8x1xi32>
    %633 = vector.shape_cast %632 : vector<8x1xi1> to vector<8x1xi1>
    %634 = vector.broadcast %633 : vector<8x1xi1> to vector<8x32xi1>
    %635 = arith.select %634, %630, %555 : vector<8x32xi1>, vector<8x32xf32>
    %636 = vector.shape_cast %632 : vector<8x1xi1> to vector<8x1xi1>
    %637 = vector.broadcast %636 : vector<8x1xi1> to vector<8x32xi1>
    %638 = arith.select %637, %628, %558 : vector<8x32xi1>, vector<8x32xf32>
    %c7_i32_157 = arith.constant 7 : i32
    %639 = arith.subi %c7_i32_157, %c7_i32_148 : i32
    %640 = arith.index_cast %639 : i32 to index
    %c0_158 = arith.constant 0 : index
    %c0_159 = arith.constant 0 : index
    %641 = vector.load %arg9[%640, %c0_158, %c0_159] : memref<8x8x128xf32, #tpu.memory_space<vmem>>, vector<1x8x128xf32>
    %642 = vector.shape_cast %641 : vector<1x8x128xf32> to vector<8x128xf32>
    %cst_160 = arith.constant dense<0.000000e+00> : vector<8x128xf32>
    %643 = tpu.matmul %594, %28, %cst_160 {dimension_numbers = #tpu.dot_dimension_numbers<[1], [0], [0], [1], [0, 0, 1, 1], [], []>} : vector<8x32xf32>, vector<32x128xf32>, vector<8x128xf32> -> vector<8x128xf32>
    %644 = arith.addf %642, %643 : vector<8x128xf32>
    %645 = vector.extract_strided_slice %644 {offsets = [0, 0], sizes = [8, 32], strides = [1, 1]} : vector<8x128xf32> to vector<8x32xf32>
    %646 = arith.negf %645 : vector<8x32xf32>
    %647 = math.exp %646 : vector<8x32xf32>
    %cst_161 = arith.constant 1.000000e+00 : f32
    %648 = vector.broadcast %cst_161 : f32 to vector<8x32xf32>
    %649 = arith.addf %648, %647 : vector<8x32xf32>
    %650 = arith.divf %648, %649 : vector<8x32xf32>
    %651 = vector.extract_strided_slice %644 {offsets = [0, 32], sizes = [8, 32], strides = [1, 1]} : vector<8x128xf32> to vector<8x32xf32>
    %652 = arith.negf %651 : vector<8x32xf32>
    %653 = math.exp %652 : vector<8x32xf32>
    %cst_162 = arith.constant 1.000000e+00 : f32
    %654 = vector.broadcast %cst_162 : f32 to vector<8x32xf32>
    %655 = arith.addf %654, %653 : vector<8x32xf32>
    %656 = arith.divf %654, %655 : vector<8x32xf32>
    %657 = vector.extract_strided_slice %644 {offsets = [0, 64], sizes = [8, 32], strides = [1, 1]} : vector<8x128xf32> to vector<8x32xf32>
    %658 = math.tanh %657 : vector<8x32xf32>
    %659 = vector.extract_strided_slice %644 {offsets = [0, 96], sizes = [8, 32], strides = [1, 1]} : vector<8x128xf32> to vector<8x32xf32>
    %660 = arith.negf %659 : vector<8x32xf32>
    %661 = math.exp %660 : vector<8x32xf32>
    %cst_163 = arith.constant 1.000000e+00 : f32
    %662 = vector.broadcast %cst_163 : f32 to vector<8x32xf32>
    %663 = arith.addf %662, %661 : vector<8x32xf32>
    %664 = arith.divf %662, %663 : vector<8x32xf32>
    %665 = arith.mulf %656, %597 : vector<8x32xf32>
    %666 = arith.mulf %650, %658 : vector<8x32xf32>
    %667 = arith.addf %665, %666 : vector<8x32xf32>
    %668 = math.tanh %667 : vector<8x32xf32>
    %669 = arith.mulf %664, %668 : vector<8x32xf32>
    %670 = vector.broadcast %600 : i32 to vector<8x1xi32>
    %671 = arith.cmpi slt, %670, %29 : vector<8x1xi32>
    %672 = vector.shape_cast %671 : vector<8x1xi1> to vector<8x1xi1>
    %673 = vector.broadcast %672 : vector<8x1xi1> to vector<8x32xi1>
    %674 = arith.select %673, %669, %594 : vector<8x32xi1>, vector<8x32xf32>
    %675 = vector.shape_cast %671 : vector<8x1xi1> to vector<8x1xi1>
    %676 = vector.broadcast %675 : vector<8x1xi1> to vector<8x32xi1>
    %677 = arith.select %676, %667, %597 : vector<8x32xi1>, vector<8x32xf32>
    %c8_i32_164 = arith.constant 8 : i32
    %c0_165 = arith.constant 0 : index
    %c0_166 = arith.constant 0 : index
    %c0_167 = arith.constant 0 : index
    %678 = vector.load %arg10[%c0_165, %c0_166, %c0_167] : memref<2x8x32xf32, #tpu.memory_space<vmem>>, vector<1x8x32xf32>
    %679 = vector.shape_cast %678 : vector<1x8x32xf32> to vector<8x32xf32>
    %680 = vector.shape_cast %635 : vector<8x32xf32> to vector<1x8x32xf32>
    tpu.vector_store %arg10[%c0_165, %c0_166, %c0_167], %680 {strides = array<i32>} : memref<2x8x32xf32, #tpu.memory_space<vmem>>, vector<1x8x32xf32>,
    %c0_168 = arith.constant 0 : index
    %c0_169 = arith.constant 0 : index
    %c0_170 = arith.constant 0 : index
    %681 = vector.load %arg11[%c0_168, %c0_169, %c0_170] : memref<2x8x32xf32, #tpu.memory_space<vmem>>, vector<1x8x32xf32>
    %682 = vector.shape_cast %681 : vector<1x8x32xf32> to vector<8x32xf32>
    %683 = vector.shape_cast %638 : vector<8x32xf32> to vector<1x8x32xf32>
    tpu.vector_store %arg11[%c0_168, %c0_169, %c0_170], %683 {strides = array<i32>} : memref<2x8x32xf32, #tpu.memory_space<vmem>>, vector<1x8x32xf32>,
    %c1_171 = arith.constant 1 : index
    %c0_172 = arith.constant 0 : index
    %c0_173 = arith.constant 0 : index
    %684 = vector.load %arg10[%c1_171, %c0_172, %c0_173] : memref<2x8x32xf32, #tpu.memory_space<vmem>>, vector<1x8x32xf32>
    %685 = vector.shape_cast %684 : vector<1x8x32xf32> to vector<8x32xf32>
    %686 = vector.shape_cast %674 : vector<8x32xf32> to vector<1x8x32xf32>
    tpu.vector_store %arg10[%c1_171, %c0_172, %c0_173], %686 {strides = array<i32>} : memref<2x8x32xf32, #tpu.memory_space<vmem>>, vector<1x8x32xf32>,
    %c1_174 = arith.constant 1 : index
    %c0_175 = arith.constant 0 : index
    %c0_176 = arith.constant 0 : index
    %687 = vector.load %arg11[%c1_174, %c0_175, %c0_176] : memref<2x8x32xf32, #tpu.memory_space<vmem>>, vector<1x8x32xf32>
    %688 = vector.shape_cast %687 : vector<1x8x32xf32> to vector<8x32xf32>
    %689 = vector.shape_cast %677 : vector<8x32xf32> to vector<1x8x32xf32>
    tpu.vector_store %arg11[%c1_174, %c0_175, %c0_176], %689 {strides = array<i32>} : memref<2x8x32xf32, #tpu.memory_space<vmem>>, vector<1x8x32xf32>,
    %c0_177 = arith.constant 0 : index
    %c0_178 = arith.constant 0 : index
    %c0_179 = arith.constant 0 : index
    %690 = vector.load %arg7[%c0_177, %c0_178, %c0_179] : memref<2x8x32xf32, #tpu.memory_space<vmem>>, vector<1x8x32xf32>
    %691 = vector.shape_cast %690 : vector<1x8x32xf32> to vector<8x32xf32>
    %692 = vector.shape_cast %635 : vector<8x32xf32> to vector<1x8x32xf32>
    tpu.vector_store %arg7[%c0_177, %c0_178, %c0_179], %692 {strides = array<i32>} : memref<2x8x32xf32, #tpu.memory_space<vmem>>, vector<1x8x32xf32>,
    %c1_180 = arith.constant 1 : index
    %c0_181 = arith.constant 0 : index
    %c0_182 = arith.constant 0 : index
    %693 = vector.load %arg7[%c1_180, %c0_181, %c0_182] : memref<2x8x32xf32, #tpu.memory_space<vmem>>, vector<1x8x32xf32>
    %694 = vector.shape_cast %693 : vector<1x8x32xf32> to vector<8x32xf32>
    %695 = vector.shape_cast %674 : vector<8x32xf32> to vector<1x8x32xf32>
    tpu.vector_store %arg7[%c1_180, %c0_181, %c0_182], %695 {strides = array<i32>} : memref<2x8x32xf32, #tpu.memory_space<vmem>>, vector<1x8x32xf32>,
    return
  }
  func.func @transform_0(%arg0: i32) -> (i32, i32) {
    %c0_i32 = arith.constant 0 : i32
    %c0_i32_0 = arith.constant 0 : i32
    %c0_i32_1 = arith.constant 0 : i32
    return %c0_i32, %c0_i32_0 : i32, i32
  }
  func.func @transform_1(%arg0: i32) -> (i32, i32, i32) {
    %c0_i32 = arith.constant 0 : i32
    %c0_i32_0 = arith.constant 0 : i32
    %c0_i32_1 = arith.constant 0 : i32
    return %arg0, %c0_i32, %c0_i32_0 : i32, i32, i32
  }
  func.func @transform_2(%arg0: i32) -> (i32, i32, i32) {
    %c0_i32 = arith.constant 0 : i32
    %0 = arith.subi %c0_i32, %arg0 : i32
    %c0_i32_0 = arith.constant 0 : i32
    %c0_i32_1 = arith.constant 0 : i32
    %c0_i32_2 = arith.constant 0 : i32
    return %0, %c0_i32_0, %c0_i32_1 : i32, i32, i32
  }
  func.func @transform_3(%arg0: i32) -> (i32, i32, i32) {
    %c0_i32 = arith.constant 0 : i32
    %c0_i32_0 = arith.constant 0 : i32
    %c0_i32_1 = arith.constant 0 : i32
    %c0_i32_2 = arith.constant 0 : i32
    return %c0_i32, %c0_i32_0, %c0_i32_1 : i32, i32, i32
  }
  func.func @transform_4(%arg0: i32) -> (i32, i32, i32) {
    %c0_i32 = arith.constant 0 : i32
    %c0_i32_0 = arith.constant 0 : i32
    %c0_i32_1 = arith.constant 0 : i32
    %c0_i32_2 = arith.constant 0 : i32
    return %c0_i32, %c0_i32_0, %c0_i32_1 : i32, i32, i32
  }
  func.func @transform_5(%arg0: i32) -> (i32, i32, i32) {
    %c0_i32 = arith.constant 0 : i32
    %c0_i32_0 = arith.constant 0 : i32
    %c0_i32_1 = arith.constant 0 : i32
    %c0_i32_2 = arith.constant 0 : i32
    return %c0_i32, %c0_i32_0, %c0_i32_1 : i32, i32, i32
  }
  func.func @transform_6(%arg0: i32) -> (i32, i32, i32) {
    %c0_i32 = arith.constant 0 : i32
    %c0_i32_0 = arith.constant 0 : i32
    %c0_i32_1 = arith.constant 0 : i32
    %c0_i32_2 = arith.constant 0 : i32
    return %c0_i32, %c0_i32_0, %c0_i32_1 : i32, i32, i32
  }
}

</mosaic_0001>

<llo_original>
// kernel: tpu_custom_call.1
$region0: #{tpu_custom_call.1}
  #allocation0 [shape = 'u32[]', space=smem, size = 0x4, offset = 0x4, fixed_abs, tag = 'smem constant byte address 0x4 - core index']
  #allocation1 [shape = 'u32[72,128]{1,0:T(1,128)}', space=vmem, size = 0x9000, scoped, tag = 'internal scratch']
  #allocation2 [shape = 'f32[8,8,128]{2,1,0:T(8,128)}', space=vmem, size = 0x8000, scoped, tag = 'scratch operand']
  #allocation3 [shape = 'f32[8,8,128]{2,1,0:T(8,128)}', space=vmem, size = 0x8000, scoped, tag = 'scratch operand']
  #allocation4 [shape = 'f32[2,8,32]{2,1,0:T(8,128)}', space=vmem, size = 0x2000, scoped, tag = 'scratch operand']
  #allocation5 [shape = 'f32[2,8,32]{2,1,0:T(8,128)}', space=vmem, size = 0x2000, scoped, tag = 'scratch operand']
  %s0 = inlined_call_operand.vmem [shape: s32[8,1], index: 0, kind: input, shape index: {}]
  %s1 = inlined_call_operand.hbm [shape: f32[8,8,64], index: 1, kind: input, shape index: {}]
  %s2 = inlined_call_operand.hbm [shape: f32[8,8,64], index: 2, kind: input, shape index: {}]
  %s3 = inlined_call_operand.hbm [shape: f32[2,64,128], index: 3, kind: input, shape index: {}]
  %s4 = inlined_call_operand.hbm [shape: f32[2,32,128], index: 4, kind: input, shape index: {}]
  %s5 = inlined_call_operand.vmem [shape: f32[2,1,128], index: 5, kind: input, shape index: {}]
  %s6 = inlined_call_operand.hbm [shape: f32[2,8,32], index: 6, kind: output, shape index: {}]
  %s7 = sld [smem:[#allocation0]]
  $region54: #{tpu_custom_call.1} parent=0
    _
  %s9 = ssub.s32 1, %s7
  %s10 = scalar_select 0, %s9, %s7
  $region1: #{tpu_custom_call.1} parent=0
    #allocation6 [shape = 'u8[32768]{0}', space=vmem, size = 0x8000, scoped, tag = 'input window, operand 1, single buffered']
    #allocation7 [shape = 's32[1]{0}', space=sflag, size = 0x4, scoped, tag = 'scoped memory for tpu_custom_call.1']
    #allocation8 [shape = 's32[1]{0}', space=sflag, size = 0x4, scoped, tag = 'scoped memory for tpu_custom_call.1']
    #allocation9 [shape = 'u8[32768]{0}', space=vmem, size = 0x8000, scoped, tag = 'input window, operand 2, single buffered']
    #allocation10 [shape = 's32[1]{0}', space=sflag, size = 0x4, scoped, tag = 'scoped memory for tpu_custom_call.1']
    #allocation11 [shape = 'u8[65536]{0}', space=vmem, size = 0x10000, scoped, tag = 'input window, operand 3, single buffered']
    #allocation12 [shape = 'u8[32768]{0}', space=vmem, size = 0x8000, scoped, tag = 'input window, operand 4, single buffered']
    #allocation13 [shape = 's32[1]{0}', space=sflag, size = 0x4, scoped, tag = 'scoped memory for tpu_custom_call.1']
    #allocation14 [shape = 'u8[8192]{0}', space=vmem, size = 0x2000, scoped, tag = 'output window, operand 0, single buffered']
    %11 = vsyncpa [#allocation7], 0
    %12 = vsyncpa [#allocation10], 0
    %13 = vsyncpa [#allocation13], 0
    %14 = vsyncpa [#allocation8], 0
    // Predicated region
    $region2: #{tpu_custom_call.1} parent=1 // pred_check
      _
    $region3: #{tpu_custom_call.1} parent=1 // pred_check_branch
      %16 = sbr.rel (0) target = $region5
    $region4: #{tpu_custom_call.1} parent=1 // pred_region
      _
    $region5: #{tpu_custom_call.1} parent=1 // pred_fallthru
      _
    // Predicated region
    $region6: #{tpu_custom_call.1} parent=1 // pred_check
      _
    $region7: #{tpu_custom_call.1} parent=1 // pred_check_branch
      %18 = sbr.rel (0) target = $region9
    $region8: #{tpu_custom_call.1} parent=1 // pred_region
      %20 = vsyncadd [#allocation7], 0
      %s21 = sshll.u32 %s1, 4
      %s22 = int_to_ptr.hbm [resolvable:$true] %s21
      %s23 = sshll.u32 [#allocation6], 4
      %s24 = int_to_ptr.vmem [resolvable:$true] %s23
      %29 = dma.hbm_to_vmem [thread:$0]  %s22, 1024, %s24, [#allocation7], 128, 128, 8
    $region9: #{tpu_custom_call.1} parent=1 // pred_fallthru
      _
    // Predicated region
    $region10: #{tpu_custom_call.1} parent=1 // pred_check
      _
    $region11: #{tpu_custom_call.1} parent=1 // pred_check_branch
      %31 = sbr.rel (0) target = $region13
    $region12: #{tpu_custom_call.1} parent=1 // pred_region
      %s32 = ssub.s32 0, 0
      %s33 = smul.u32 8, %s32
      %35 = vsyncadd [#allocation10], 0
      %s36 = smul.addr %s33, 8
      %s37 = scalar_lea.hbm %s2, %s36
      %s38 = sshll.u32 %s37, 4
      %s39 = int_to_ptr.hbm [resolvable:$true] %s38
      %s40 = sshll.u32 [#allocation9], 4
      %s41 = int_to_ptr.vmem [resolvable:$true] %s40
      %46 = dma.hbm_to_vmem [thread:$0]  %s39, 1024, %s41, [#allocation10], 128, 128, 8
    $region13: #{tpu_custom_call.1} parent=1 // pred_fallthru
      _
    // Predicated region
    $region14: #{tpu_custom_call.1} parent=1 // pred_check
      _
    $region15: #{tpu_custom_call.1} parent=1 // pred_check_branch
      %48 = sbr.rel (0) target = $region17
    $region16: #{tpu_custom_call.1} parent=1 // pred_region
      %50 = vsyncadd [#allocation10], 0
      %s51 = sshll.u32 %s3, 4
      %s52 = int_to_ptr.hbm [resolvable:$true] %s51
      %s53 = sshll.u32 [#allocation11], 4
      %s54 = int_to_ptr.vmem [resolvable:$true] %s53
      %59 = dma.hbm_to_vmem [thread:$0]  %s52, 2048, %s54, [#allocation10], 128, 128, 8
    $region17: #{tpu_custom_call.1} parent=1 // pred_fallthru
      _
    // Predicated region
    $region18: #{tpu_custom_call.1} parent=1 // pred_check
      _
    $region19: #{tpu_custom_call.1} parent=1 // pred_check_branch
      %61 = sbr.rel (0) target = $region21
    $region20: #{tpu_custom_call.1} parent=1 // pred_region
      %63 = vsyncadd [#allocation13], 0
      %s64 = sshll.u32 %s4, 4
      %s65 = int_to_ptr.hbm [resolvable:$true] %s64
      %s66 = sshll.u32 [#allocation12], 4
      %s67 = int_to_ptr.vmem [resolvable:$true] %s66
      %72 = dma.hbm_to_vmem [thread:$0]  %s65, 1024, %s67, [#allocation13], 128, 128, 8
    $region21: #{tpu_custom_call.1} parent=1 // pred_fallthru
      _
    // Predicated region
    $region22: #{tpu_custom_call.1} parent=1 // pred_check
      _
    $region23: #{tpu_custom_call.1} parent=1 // pred_check_branch
      %74 = sbr.rel (0) target = $region25
    $region24: #{tpu_custom_call.1} parent=1 // pred_region
      _
    $region25: #{tpu_custom_call.1} parent=1 // pred_fallthru
      _
    // Predicated region
    $region26: #{tpu_custom_call.1} parent=1 // pred_check
      _
    $region27: #{tpu_custom_call.1} parent=1 // pred_check_branch
      %76 = sbr.rel (0) target = $region29
    $region28: #{tpu_custom_call.1} parent=1 // pred_region
      %78 = dma.done [#allocation7], 1024
    $region29: #{tpu_custom_call.1} parent=1 // pred_fallthru
      _
    // Predicated region
    $region30: #{tpu_custom_call.1} parent=1 // pred_check
      _
    $region31: #{tpu_custom_call.1} parent=1 // pred_check_branch
      %80 = sbr.rel (0) target = $region33
    $region32: #{tpu_custom_call.1} parent=1 // pred_region
      %82 = dma.done [#allocation10], 1024
    $region33: #{tpu_custom_call.1} parent=1 // pred_fallthru
      _
    // Predicated region
    $region34: #{tpu_custom_call.1} parent=1 // pred_check
      _
    $region35: #{tpu_custom_call.1} parent=1 // pred_check_branch
      %84 = sbr.rel (0) target = $region37
    $region36: #{tpu_custom_call.1} parent=1 // pred_region
      %86 = dma.done [#allocation10], 2048
    $region37: #{tpu_custom_call.1} parent=1 // pred_fallthru
      _
    // Predicated region
    $region38: #{tpu_custom_call.1} parent=1 // pred_check
      _
    $region39: #{tpu_custom_call.1} parent=1 // pred_check_branch
      %88 = sbr.rel (0) target = $region41
    $region40: #{tpu_custom_call.1} parent=1 // pred_region
      %90 = dma.done [#allocation13], 1024
    $region41: #{tpu_custom_call.1} parent=1 // pred_fallthru
      _
    %s91 = ssub.s32 0, 0
    %s92 = smul.u32 8, %s91
    %p93 = scmp.eq.s32.totalorder 0, 0
    // Predicated region
    $region42: #{tpu_custom_call.1} parent=1 // pred_check
      %p94 = pneg %p93
    $region43: #{tpu_custom_call.1} parent=1 // pred_check_branch
      %96 = sbr.rel (%p94) target = $region45
    $region44: #{tpu_custom_call.1} parent=1 // pred_region
      %vm97 = vcmask 261120
      %98 = vst.msk [vmem:[#allocation4] sm:$0xff] %vm97, 0.0
      %99 = vst.msk [vmem:[#allocation4 + $0x8] sm:$0xff] %vm97, 0.0
      %100 = vst.msk [vmem:[#allocation5] sm:$0xff] %vm97, 0.0
      %101 = vst.msk [vmem:[#allocation5 + $0x8] sm:$0xff] %vm97, 0.0
    $region45: #{tpu_custom_call.1} parent=1 // pred_fallthru
      _
    %v102 = vld [vmem:[#allocation6] sm:$0xff]
    %v103 = vld [vmem:[#allocation6 + $0x8] sm:$0xff]
    %v104 = vld [vmem:[#allocation6 + $0x10] sm:$0xff]
    %v105 = vld [vmem:[#allocation6 + $0x18] sm:$0xff]
    %v106 = vld [vmem:[#allocation6 + $0x20] sm:$0xff]
    %v107 = vld [vmem:[#allocation6 + $0x28] sm:$0xff]
    %v108 = vld [vmem:[#allocation6 + $0x30] sm:$0xff]
    %v109 = vld [vmem:[#allocation6 + $0x38] sm:$0xff]
    %v110 = vld [vmem:[#allocation9] sm:$0xff]
    %v111 = vld [vmem:[#allocation9 + $0x8] sm:$0xff]
    %v112 = vld [vmem:[#allocation9 + $0x10] sm:$0xff]
    %v113 = vld [vmem:[#allocation9 + $0x18] sm:$0xff]
    %v114 = vld [vmem:[#allocation9 + $0x20] sm:$0xff]
    %v115 = vld [vmem:[#allocation9 + $0x28] sm:$0xff]
    %v116 = vld [vmem:[#allocation9 + $0x30] sm:$0xff]
    %v117 = vld [vmem:[#allocation9 + $0x38] sm:$0xff]
    %v118 = vld [vmem:[#allocation11] sm:$0xff]
    %v119 = vld [vmem:[#allocation11 + $0x8] sm:$0xff]
    %v120 = vld [vmem:[#allocation11 + $0x10] sm:$0xff]
    %v121 = vld [vmem:[#allocation11 + $0x18] sm:$0xff]
    %v122 = vld [vmem:[#allocation11 + $0x20] sm:$0xff]
    %v123 = vld [vmem:[#allocation11 + $0x28] sm:$0xff]
    %v124 = vld [vmem:[#allocation11 + $0x30] sm:$0xff]
    %v125 = vld [vmem:[#allocation11 + $0x38] sm:$0xff]
    %v126 = vld [vmem:[%s5] sm:$0x1]
    %v128 = vperm.slane %v126, 0
    %vm130 = vcmask 523264
    %v132 = vsel %vm130, %v102, 0
    %v135 = vsel %vm130, %v103, 0
    %v138 = vsel %vm130, %v104, 0
    %v141 = vsel %vm130, %v105, 0
    %v144 = vsel %vm130, %v106, 0
    %v147 = vsel %vm130, %v107, 0
    %v150 = vsel %vm130, %v108, 0
    %v153 = vsel %vm130, %v109, 0
    %155 = vmatpush.msra.mxu0 0.0
    %156 = vmatpush.msra.mxu0 0.0
    %157 = vmatpush.msra.mxu0 0.0
    %158 = vmatpush.msra.mxu0 0.0
    %159 = vmatpush.msra.mxu0 0.0
    %160 = vmatpush.msra.mxu0 0.0
    %161 = vmatpush.msra.mxu0 0.0
    %162 = vmatpush.msra.mxu0 0.0
    %163 = vmatpush.msra.mxu0 %v125
    %164 = vmatpush.msra.mxu0 %v124
    %165 = vmatpush.msra.mxu0 %v123
    %166 = vmatpush.msra.mxu0 %v122
    %167 = vmatpush.msra.mxu0 %v121
    %168 = vmatpush.msra.mxu0 %v120
    %169 = vmatpush.msra.mxu0 %v119
    %170 = vmatpush.msra.mxu0 %v118
    %171 = vmatmul.f32.gmra.mxu0 %v132
    %v172 = vpop.f32.mrf.mxu0
    %v173 = vadd.f32 %v128, %v172
    %174 = vmatmul.f32.gmra.mxu0 %v135
    %v175 = vpop.f32.mrf.mxu0
    %v176 = vadd.f32 %v128, %v175
    %177 = vmatmul.f32.gmra.mxu0 %v138
    %v178 = vpop.f32.mrf.mxu0
    %v179 = vadd.f32 %v128, %v178
    %180 = vmatmul.f32.gmra.mxu0 %v141
    %v181 = vpop.f32.mrf.mxu0
    %v182 = vadd.f32 %v128, %v181
    %183 = vmatmul.f32.gmra.mxu0 %v144
    %v184 = vpop.f32.mrf.mxu0
    %v185 = vadd.f32 %v128, %v184
    %186 = vmatmul.f32.gmra.mxu0 %v147
    %v187 = vpop.f32.mrf.mxu0
    %v188 = vadd.f32 %v128, %v187
    %189 = vmatmul.f32.gmra.mxu0 %v150
    %v190 = vpop.f32.mrf.mxu0
    %v191 = vadd.f32 %v128, %v190
    %192 = vmatmul.f32.gmra.mxu0 %v153
    %v193 = vpop.f32.mrf.mxu0
    %v194 = vadd.f32 %v128, %v193
    %195 = vdwg.mxu0
    %196 = vst [vmem:[#allocation2] sm:$0xff] %v173
    %197 = vst [vmem:[#allocation2 + $0x8] sm:$0xff] %v176
    %198 = vst [vmem:[#allocation2 + $0x10] sm:$0xff] %v179
    %199 = vst [vmem:[#allocation2 + $0x18] sm:$0xff] %v182
    %200 = vst [vmem:[#allocation2 + $0x20] sm:$0xff] %v185
    %201 = vst [vmem:[#allocation2 + $0x28] sm:$0xff] %v188
    %202 = vst [vmem:[#allocation2 + $0x30] sm:$0xff] %v191
    %203 = vst [vmem:[#allocation2 + $0x38] sm:$0xff] %v194
    %s204 = scalar_lea.vmem [#allocation11], 64
    %v205 = vld [vmem:[%s204] sm:$0xff]
    %v206 = vld [vmem:[%s204 + $0x8] sm:$0xff]
    %v207 = vld [vmem:[%s204 + $0x10] sm:$0xff]
    %v208 = vld [vmem:[%s204 + $0x18] sm:$0xff]
    %v209 = vld [vmem:[%s204 + $0x20] sm:$0xff]
    %v210 = vld [vmem:[%s204 + $0x28] sm:$0xff]
    %v211 = vld [vmem:[%s204 + $0x30] sm:$0xff]
    %v212 = vld [vmem:[%s204 + $0x38] sm:$0xff]
    %s213 = scalar_lea.vmem %s5, 1
    %v214 = vld [vmem:[%s213] sm:$0x1]
    %v216 = vperm.slane %v214, 0
    %v219 = vsel %vm130, %v110, 0
    %v222 = vsel %vm130, %v111, 0
    %v225 = vsel %vm130, %v112, 0
    %v228 = vsel %vm130, %v113, 0
    %v231 = vsel %vm130, %v114, 0
    %v234 = vsel %vm130, %v115, 0
    %v237 = vsel %vm130, %v116, 0
    %v240 = vsel %vm130, %v117, 0
    %242 = vmatpush.msra.mxu0 0.0
    %243 = vmatpush.msra.mxu0 0.0
    %244 = vmatpush.msra.mxu0 0.0
    %245 = vmatpush.msra.mxu0 0.0
    %246 = vmatpush.msra.mxu0 0.0
    %247 = vmatpush.msra.mxu0 0.0
    %248 = vmatpush.msra.mxu0 0.0
    %249 = vmatpush.msra.mxu0 0.0
    %250 = vmatpush.msra.mxu0 %v212
    %251 = vmatpush.msra.mxu0 %v211
    %252 = vmatpush.msra.mxu0 %v210
    %253 = vmatpush.msra.mxu0 %v209
    %254 = vmatpush.msra.mxu0 %v208
    %255 = vmatpush.msra.mxu0 %v207
    %256 = vmatpush.msra.mxu0 %v206
    %257 = vmatpush.msra.mxu0 %v205
    %258 = vmatmul.f32.gmra.mxu0 %v219
    %v259 = vpop.f32.mrf.mxu0
    %v260 = vadd.f32 %v216, %v259
    %261 = vmatmul.f32.gmra.mxu0 %v222
    %v262 = vpop.f32.mrf.mxu0
    %v263 = vadd.f32 %v216, %v262
    %264 = vmatmul.f32.gmra.mxu0 %v225
    %v265 = vpop.f32.mrf.mxu0
    %v266 = vadd.f32 %v216, %v265
    %267 = vmatmul.f32.gmra.mxu0 %v228
    %v268 = vpop.f32.mrf.mxu0
    %v269 = vadd.f32 %v216, %v268
    %270 = vmatmul.f32.gmra.mxu0 %v231
    %v271 = vpop.f32.mrf.mxu0
    %v272 = vadd.f32 %v216, %v271
    %273 = vmatmul.f32.gmra.mxu0 %v234
    %v274 = vpop.f32.mrf.mxu0
    %v275 = vadd.f32 %v216, %v274
    %276 = vmatmul.f32.gmra.mxu0 %v237
    %v277 = vpop.f32.mrf.mxu0
    %v278 = vadd.f32 %v216, %v277
    %279 = vmatmul.f32.gmra.mxu0 %v240
    %v280 = vpop.f32.mrf.mxu0
    %v281 = vadd.f32 %v216, %v280
    %282 = vdwg.mxu0
    %283 = vst [vmem:[#allocation3] sm:$0xff] %v260
    %284 = vst [vmem:[#allocation3 + $0x8] sm:$0xff] %v263
    %285 = vst [vmem:[#allocation3 + $0x10] sm:$0xff] %v266
    %286 = vst [vmem:[#allocation3 + $0x18] sm:$0xff] %v269
    %287 = vst [vmem:[#allocation3 + $0x20] sm:$0xff] %v272
    %288 = vst [vmem:[#allocation3 + $0x28] sm:$0xff] %v275
    %289 = vst [vmem:[#allocation3 + $0x30] sm:$0xff] %v278
    %290 = vst [vmem:[#allocation3 + $0x38] sm:$0xff] %v281
    %v291 = vld [vmem:[#allocation12] sm:$0xff]
    %v292 = vld [vmem:[#allocation12 + $0x8] sm:$0xff]
    %v293 = vld [vmem:[#allocation12 + $0x10] sm:$0xff]
    %v294 = vld [vmem:[#allocation12 + $0x18] sm:$0xff]
    %s295 = scalar_lea.vmem [#allocation12], 32
    %v296 = vld [vmem:[%s295] sm:$0xff]
    %v297 = vld [vmem:[%s295 + $0x8] sm:$0xff]
    %v298 = vld [vmem:[%s295 + $0x10] sm:$0xff]
    %v299 = vld [vmem:[%s295 + $0x18] sm:$0xff]
    %v300 = vld [vmem:[%s0] sm:$0xff]
    %v301 = vld [vmem:[#allocation4] sm:$0xff]
    %v302 = vld [vmem:[#allocation5] sm:$0xff]
    %s303 = scalar_lea.vmem [#allocation4], 8
    %v304 = vld [vmem:[%s303] sm:$0xff]
    %s305 = scalar_lea.vmem [#allocation5], 8
    %v306 = vld [vmem:[%s305] sm:$0xff]
    %s307 = smul.u32 0, 8
    %s308 = ssub.s32 7, %s307
    %v309 = vld [vmem:[#allocation2] sm:$0xff]
    %vm310 = vcmask 261120
    %v312 = vsel %vm310, %v301, 0
    %314 = vmatpush.msra.mxu0 0.0
    %315 = vmatpush.msra.mxu0 0.0
    %316 = vmatpush.msra.mxu0 0.0
    %317 = vmatpush.msra.mxu0 0.0
    %318 = vmatpush.msra.mxu0 0.0
    %319 = vmatpush.msra.mxu0 0.0
    %320 = vmatpush.msra.mxu0 0.0
    %321 = vmatpush.msra.mxu0 0.0
    %322 = vmatpush.msra.mxu0 0.0
    %323 = vmatpush.msra.mxu0 0.0
    %324 = vmatpush.msra.mxu0 0.0
    %325 = vmatpush.msra.mxu0 0.0
    %326 = vmatpush.msra.mxu0 %v294
    %327 = vmatpush.msra.mxu0 %v293
    %328 = vmatpush.msra.mxu0 %v292
    %329 = vmatpush.msra.mxu0 %v291
    %330 = vmatmul.f32.gmra.mxu0 %v312
    %v331 = vpop.f32.mrf.mxu0
    %v332 = vadd.f32 0.0, %v331
    %333 = vdwg.mxu0
    %v334 = vadd.f32 %v309, %v332
    %v335 = vxor.u32 %v334, 2147483648
    %v336 = vmul.f32 %v335, 1.442695
    %v337 = vpow.pop %v336
    %v338 = vadd.f32 %v337, 1.0
    %v339 = vrcp.pop %v338
    %v340 = vmul.f32 %v338, %v339
    %v341 = vsub.f32 1.0, %v340
    %v342 = vmul.f32 %v339, %v341
    %v343 = vadd.f32 %v339, %v342
    %vm344 = vweird.f32 %v338
    %vm345 = vweird.f32 %v339
    %vm346 = vmor %vm344, %vm345
    %v347 = vsel %vm346, %v339, %v343
    %v348 = vand.u32 2147483647, %v338
    %vm349 = vcmp.eq.f32.partialorder %v348, 8.507059e+37
    %v350 = vand.u32 %v338, 2147483648
    %v351 = vor.u32 1.1754944e-38, %v350
    %v352 = vsel %vm349, %v351, %v347
    %v353 = vmul.f32 1.0, %v352
    %v354 = vtanh.pop %v334
    %356 = vrot.lane.b32.xlu0 %v302, 32
    %v357 = vpop.permute.xlu0 %356
    %v359 = vmul.f32 %v353, %v357
    %361 = vrot.lane.b32.xlu0 %v354, 64
    %v362 = vpop.permute.xlu0 %361
    %v364 = vmul.f32 %v353, %v362
    %366 = vrot.lane.b32.xlu0 %v364, 32
    %v367 = vpop.permute.xlu0 %366
    %v369 = vadd.f32 %v359, %v367
    %v370 = vtanh.pop %v369
    %372 = vrot.lane.b32.xlu0 %v370, 64
    %v373 = vpop.permute.xlu0 %372
    %v375 = vmul.f32 %v353, %v373
    %v376 = vstv %s307
    %vm377 = vcmp.lt.s32.totalorder %v376, %v300
    %v378 = vsel %vm377, 1, 0
    %379 = vset.pattern.permute.xlu0 0
    %380 = vperm.xlu0 %379, %v378
    %v381 = vpop.permute.xlu0 %380
    %vm382 = vcmp.eq.s32.totalorder %v381, 1
    %383 = vrot.lane.b32.xlu0 %v301, 96
    %v384 = vpop.permute.xlu0 %383
    %v386 = vsel %vm382, %v375, %v384
    %v387 = vsel %vm382, %v369, %v357
    %s388 = scalar_lea.vmem [#allocation3], 56
    %v389 = vld [vmem:[%s388] sm:$0xff]
    %v391 = vsel %vm310, %v304, 0
    %393 = vmatpush.msra.mxu0 0.0
    %394 = vmatpush.msra.mxu0 0.0
    %395 = vmatpush.msra.mxu0 0.0
    %396 = vmatpush.msra.mxu0 0.0
    %397 = vmatpush.msra.mxu0 0.0
    %398 = vmatpush.msra.mxu0 0.0
    %399 = vmatpush.msra.mxu0 0.0
    %400 = vmatpush.msra.mxu0 0.0
    %401 = vmatpush.msra.mxu0 0.0
    %402 = vmatpush.msra.mxu0 0.0
    %403 = vmatpush.msra.mxu0 0.0
    %404 = vmatpush.msra.mxu0 0.0
    %405 = vmatpush.msra.mxu0 %v299
    %406 = vmatpush.msra.mxu0 %v298
    %407 = vmatpush.msra.mxu0 %v297
    %408 = vmatpush.msra.mxu0 %v296
    %409 = vmatmul.f32.gmra.mxu0 %v391
    %v410 = vpop.f32.mrf.mxu0
    %v411 = vadd.f32 0.0, %v410
    %412 = vdwg.mxu0
    %v413 = vadd.f32 %v389, %v411
    %v414 = vxor.u32 %v413, 2147483648
    %v415 = vmul.f32 %v414, 1.442695
    %v416 = vpow.pop %v415
    %v417 = vadd.f32 %v416, 1.0
    %v418 = vrcp.pop %v417
    %v419 = vmul.f32 %v417, %v418
    %v420 = vsub.f32 1.0, %v419
    %v421 = vmul.f32 %v418, %v420
    %v422 = vadd.f32 %v418, %v421
    %vm423 = vweird.f32 %v417
    %vm424 = vweird.f32 %v418
    %vm425 = vmor %vm423, %vm424
    %v426 = vsel %vm425, %v418, %v422
    %v427 = vand.u32 2147483647, %v417
    %vm428 = vcmp.eq.f32.partialorder %v427, 8.507059e+37
    %v429 = vand.u32 %v417, 2147483648
    %v430 = vor.u32 1.1754944e-38, %v429
    %v431 = vsel %vm428, %v430, %v426
    %v432 = vmul.f32 1.0, %v431
    %v433 = vtanh.pop %v413
    %435 = vrot.lane.b32.xlu0 %v306, 32
    %v436 = vpop.permute.xlu0 %435
    %v438 = vmul.f32 %v432, %v436
    %440 = vrot.lane.b32.xlu0 %v433, 64
    %v441 = vpop.permute.xlu0 %440
    %v443 = vmul.f32 %v432, %v441
    %445 = vrot.lane.b32.xlu0 %v443, 32
    %v446 = vpop.permute.xlu0 %445
    %v448 = vadd.f32 %v438, %v446
    %v449 = vtanh.pop %v448
    %451 = vrot.lane.b32.xlu0 %v449, 64
    %v452 = vpop.permute.xlu0 %451
    %v454 = vmul.f32 %v432, %v452
    %v455 = vstv %s308
    %vm456 = vcmp.lt.s32.totalorder %v455, %v300
    %v457 = vsel %vm456, 1, 0
    %458 = vset.pattern.permute.xlu0 0
    %459 = vperm.xlu0 %458, %v457
    %v460 = vpop.permute.xlu0 %459
    %vm461 = vcmp.eq.s32.totalorder %v460, 1
    %462 = vrot.lane.b32.xlu0 %v304, 96
    %v463 = vpop.permute.xlu0 %462
    %v465 = vsel %vm461, %v454, %v463
    %v466 = vsel %vm461, %v448, %v436
    %s467 = sadd.s32 %s307, 1
    %s468 = ssub.s32 6, %s307
    %s469 = scalar_lea.vmem [#allocation2], 8
    %v470 = vld [vmem:[%s469] sm:$0xff]
    %472 = vrot.lane.b32.xlu0 %v386, 32
    %v473 = vpop.permute.xlu0 %472
    %v474 = vsel %vm310, %v473, 0
    %476 = vmatpush.msra.mxu0 0.0
    %477 = vmatpush.msra.mxu0 0.0
    %478 = vmatpush.msra.mxu0 0.0
    %479 = vmatpush.msra.mxu0 0.0
    %480 = vmatpush.msra.mxu0 0.0
    %481 = vmatpush.msra.mxu0 0.0
    %482 = vmatpush.msra.mxu0 0.0
    %483 = vmatpush.msra.mxu0 0.0
    %484 = vmatpush.msra.mxu0 0.0
    %485 = vmatpush.msra.mxu0 0.0
    %486 = vmatpush.msra.mxu0 0.0
    %487 = vmatpush.msra.mxu0 0.0
    %488 = vmatpush.msra.mxu0 %v294
    %489 = vmatpush.msra.mxu0 %v293
    %490 = vmatpush.msra.mxu0 %v292
    %491 = vmatpush.msra.mxu0 %v291
    %492 = vmatmul.f32.gmra.mxu0 %v474
    %v493 = vpop.f32.mrf.mxu0
    %v494 = vadd.f32 0.0, %v493
    %495 = vdwg.mxu0
    %v496 = vadd.f32 %v470, %v494
    %v497 = vxor.u32 %v496, 2147483648
    %v498 = vmul.f32 %v497, 1.442695
    %v499 = vpow.pop %v498
    %v500 = vadd.f32 %v499, 1.0
    %v501 = vrcp.pop %v500
    %v502 = vmul.f32 %v500, %v501
    %v503 = vsub.f32 1.0, %v502
    %v504 = vmul.f32 %v501, %v503
    %v505 = vadd.f32 %v501, %v504
    %vm506 = vweird.f32 %v500
    %vm507 = vweird.f32 %v501
    %vm508 = vmor %vm506, %vm507
    %v509 = vsel %vm508, %v501, %v505
    %v510 = vand.u32 2147483647, %v500
    %vm511 = vcmp.eq.f32.partialorder %v510, 8.507059e+37
    %v512 = vand.u32 %v500, 2147483648
    %v513 = vor.u32 1.1754944e-38, %v512
    %v514 = vsel %vm511, %v513, %v509
    %v515 = vmul.f32 1.0, %v514
    %v516 = vtanh.pop %v496
    %v517 = vmul.f32 %v515, %v387
    %519 = vrot.lane.b32.xlu0 %v516, 64
    %v520 = vpop.permute.xlu0 %519
    %v522 = vmul.f32 %v515, %v520
    %524 = vrot.lane.b32.xlu0 %v522, 32
    %v525 = vpop.permute.xlu0 %524
    %v527 = vadd.f32 %v517, %v525
    %v528 = vtanh.pop %v527
    %530 = vrot.lane.b32.xlu0 %v528, 64
    %v531 = vpop.permute.xlu0 %530
    %v533 = vmul.f32 %v515, %v531
    %v534 = vstv %s467
    %vm535 = vcmp.lt.s32.totalorder %v534, %v300
    %v536 = vsel %vm535, 1, 0
    %537 = vset.pattern.permute.xlu0 0
    %538 = vperm.xlu0 %537, %v536
    %v539 = vpop.permute.xlu0 %538
    %vm540 = vcmp.eq.s32.totalorder %v539, 1
    %v541 = vsel %vm540, %v533, %v386
    %v542 = vsel %vm540, %v527, %v387
    %s543 = scalar_lea.vmem [#allocation3], 48
    %v544 = vld [vmem:[%s543] sm:$0xff]
    %546 = vrot.lane.b32.xlu0 %v465, 32
    %v547 = vpop.permute.xlu0 %546
    %v548 = vsel %vm310, %v547, 0
    %550 = vmatpush.msra.mxu0 0.0
    %551 = vmatpush.msra.mxu0 0.0
    %552 = vmatpush.msra.mxu0 0.0
    %553 = vmatpush.msra.mxu0 0.0
    %554 = vmatpush.msra.mxu0 0.0
    %555 = vmatpush.msra.mxu0 0.0
    %556 = vmatpush.msra.mxu0 0.0
    %557 = vmatpush.msra.mxu0 0.0
    %558 = vmatpush.msra.mxu0 0.0
    %559 = vmatpush.msra.mxu0 0.0
    %560 = vmatpush.msra.mxu0 0.0
    %561 = vmatpush.msra.mxu0 0.0
    %562 = vmatpush.msra.mxu0 %v299
    %563 = vmatpush.msra.mxu0 %v298
    %564 = vmatpush.msra.mxu0 %v297
    %565 = vmatpush.msra.mxu0 %v296
    %566 = vmatmul.f32.gmra.mxu0 %v548
    %v567 = vpop.f32.mrf.mxu0
    %v568 = vadd.f32 0.0, %v567
    %569 = vdwg.mxu0
    %v570 = vadd.f32 %v544, %v568
    %v571 = vxor.u32 %v570, 2147483648
    %v572 = vmul.f32 %v571, 1.442695
    %v573 = vpow.pop %v572
    %v574 = vadd.f32 %v573, 1.0
    %v575 = vrcp.pop %v574
    %v576 = vmul.f32 %v574, %v575
    %v577 = vsub.f32 1.0, %v576
    %v578 = vmul.f32 %v575, %v577
    %v579 = vadd.f32 %v575, %v578
    %vm580 = vweird.f32 %v574
    %vm581 = vweird.f32 %v575
    %vm582 = vmor %vm580, %vm581
    %v583 = vsel %vm582, %v575, %v579
    %v584 = vand.u32 2147483647, %v574
    %vm585 = vcmp.eq.f32.partialorder %v584, 8.507059e+37
    %v586 = vand.u32 %v574, 2147483648
    %v587 = vor.u32 1.1754944e-38, %v586
    %v588 = vsel %vm585, %v587, %v583
    %v589 = vmul.f32 1.0, %v588
    %v590 = vtanh.pop %v570
    %v591 = vmul.f32 %v589, %v466
    %593 = vrot.lane.b32.xlu0 %v590, 64
    %v594 = vpop.permute.xlu0 %593
    %v596 = vmul.f32 %v589, %v594
    %598 = vrot.lane.b32.xlu0 %v596, 32
    %v599 = vpop.permute.xlu0 %598
    %v601 = vadd.f32 %v591, %v599
    %v602 = vtanh.pop %v601
    %604 = vrot.lane.b32.xlu0 %v602, 64
    %v605 = vpop.permute.xlu0 %604
    %v607 = vmul.f32 %v589, %v605
    %v608 = vstv %s468
    %vm609 = vcmp.lt.s32.totalorder %v608, %v300
    %v610 = vsel %vm609, 1, 0
    %611 = vset.pattern.permute.xlu0 0
    %612 = vperm.xlu0 %611, %v610
    %v613 = vpop.permute.xlu0 %612
    %vm614 = vcmp.eq.s32.totalorder %v613, 1
    %v615 = vsel %vm614, %v607, %v465
    %v616 = vsel %vm614, %v601, %v466
    %s617 = sadd.s32 %s307, 2
    %s618 = ssub.s32 5, %s307
    %s619 = scalar_lea.vmem [#allocation2], 16
    %v620 = vld [vmem:[%s619] sm:$0xff]
    %622 = vrot.lane.b32.xlu0 %v541, 32
    %v623 = vpop.permute.xlu0 %622
    %v624 = vsel %vm310, %v623, 0
    %626 = vmatpush.msra.mxu0 0.0
    %627 = vmatpush.msra.mxu0 0.0
    %628 = vmatpush.msra.mxu0 0.0
    %629 = vmatpush.msra.mxu0 0.0
    %630 = vmatpush.msra.mxu0 0.0
    %631 = vmatpush.msra.mxu0 0.0
    %632 = vmatpush.msra.mxu0 0.0
    %633 = vmatpush.msra.mxu0 0.0
    %634 = vmatpush.msra.mxu0 0.0
    %635 = vmatpush.msra.mxu0 0.0
    %636 = vmatpush.msra.mxu0 0.0
    %637 = vmatpush.msra.mxu0 0.0
    %638 = vmatpush.msra.mxu0 %v294
    %639 = vmatpush.msra.mxu0 %v293
    %640 = vmatpush.msra.mxu0 %v292
    %641 = vmatpush.msra.mxu0 %v291
    %642 = vmatmul.f32.gmra.mxu0 %v624
    %v643 = vpop.f32.mrf.mxu0
    %v644 = vadd.f32 0.0, %v643
    %645 = vdwg.mxu0
    %v646 = vadd.f32 %v620, %v644
    %v647 = vxor.u32 %v646, 2147483648
    %v648 = vmul.f32 %v647, 1.442695
    %v649 = vpow.pop %v648
    %v650 = vadd.f32 %v649, 1.0
    %v651 = vrcp.pop %v650
    %v652 = vmul.f32 %v650, %v651
    %v653 = vsub.f32 1.0, %v652
    %v654 = vmul.f32 %v651, %v653
    %v655 = vadd.f32 %v651, %v654
    %vm656 = vweird.f32 %v650
    %vm657 = vweird.f32 %v651
    %vm658 = vmor %vm656, %vm657
    %v659 = vsel %vm658, %v651, %v655
    %v660 = vand.u32 2147483647, %v650
    %vm661 = vcmp.eq.f32.partialorder %v660, 8.507059e+37
    %v662 = vand.u32 %v650, 2147483648
    %v663 = vor.u32 1.1754944e-38, %v662
    %v664 = vsel %vm661, %v663, %v659
    %v665 = vmul.f32 1.0, %v664
    %v666 = vtanh.pop %v646
    %v667 = vmul.f32 %v665, %v542
    %669 = vrot.lane.b32.xlu0 %v666, 64
    %v670 = vpop.permute.xlu0 %669
    %v672 = vmul.f32 %v665, %v670
    %674 = vrot.lane.b32.xlu0 %v672, 32
    %v675 = vpop.permute.xlu0 %674
    %v677 = vadd.f32 %v667, %v675
    %v678 = vtanh.pop %v677
    %680 = vrot.lane.b32.xlu0 %v678, 64
    %v681 = vpop.permute.xlu0 %680
    %v683 = vmul.f32 %v665, %v681
    %v684 = vstv %s617
    %vm685 = vcmp.lt.s32.totalorder %v684, %v300
    %v686 = vsel %vm685, 1, 0
    %687 = vset.pattern.permute.xlu0 0
    %688 = vperm.xlu0 %687, %v686
    %v689 = vpop.permute.xlu0 %688
    %vm690 = vcmp.eq.s32.totalorder %v689, 1
    %v691 = vsel %vm690, %v683, %v541
    %v692 = vsel %vm690, %v677, %v542
    %s693 = scalar_lea.vmem [#allocation3], 40
    %v694 = vld [vmem:[%s693] sm:$0xff]
    %696 = vrot.lane.b32.xlu0 %v615, 32
    %v697 = vpop.permute.xlu0 %696
    %v698 = vsel %vm310, %v697, 0
    %700 = vmatpush.msra.mxu0 0.0
    %701 = vmatpush.msra.mxu0 0.0
    %702 = vmatpush.msra.mxu0 0.0
    %703 = vmatpush.msra.mxu0 0.0
    %704 = vmatpush.msra.mxu0 0.0
    %705 = vmatpush.msra.mxu0 0.0
    %706 = vmatpush.msra.mxu0 0.0
    %707 = vmatpush.msra.mxu0 0.0
    %708 = vmatpush.msra.mxu0 0.0
    %709 = vmatpush.msra.mxu0 0.0
    %710 = vmatpush.msra.mxu0 0.0
    %711 = vmatpush.msra.mxu0 0.0
    %712 = vmatpush.msra.mxu0 %v299
    %713 = vmatpush.msra.mxu0 %v298
    %714 = vmatpush.msra.mxu0 %v297
    %715 = vmatpush.msra.mxu0 %v296
    %716 = vmatmul.f32.gmra.mxu0 %v698
    %v717 = vpop.f32.mrf.mxu0
    %v718 = vadd.f32 0.0, %v717
    %719 = vdwg.mxu0
    %v720 = vadd.f32 %v694, %v718
    %v721 = vxor.u32 %v720, 2147483648
    %v722 = vmul.f32 %v721, 1.442695
    %v723 = vpow.pop %v722
    %v724 = vadd.f32 %v723, 1.0
    %v725 = vrcp.pop %v724
    %v726 = vmul.f32 %v724, %v725
    %v727 = vsub.f32 1.0, %v726
    %v728 = vmul.f32 %v725, %v727
    %v729 = vadd.f32 %v725, %v728
    %vm730 = vweird.f32 %v724
    %vm731 = vweird.f32 %v725
    %vm732 = vmor %vm730, %vm731
    %v733 = vsel %vm732, %v725, %v729
    %v734 = vand.u32 2147483647, %v724
    %vm735 = vcmp.eq.f32.partialorder %v734, 8.507059e+37
    %v736 = vand.u32 %v724, 2147483648
    %v737 = vor.u32 1.1754944e-38, %v736
    %v738 = vsel %vm735, %v737, %v733
    %v739 = vmul.f32 1.0, %v738
    %v740 = vtanh.pop %v720
    %v741 = vmul.f32 %v739, %v616
    %743 = vrot.lane.b32.xlu0 %v740, 64
    %v744 = vpop.permute.xlu0 %743
    %v746 = vmul.f32 %v739, %v744
    %748 = vrot.lane.b32.xlu0 %v746, 32
    %v749 = vpop.permute.xlu0 %748
    %v751 = vadd.f32 %v741, %v749
    %v752 = vtanh.pop %v751
    %754 = vrot.lane.b32.xlu0 %v752, 64
    %v755 = vpop.permute.xlu0 %754
    %v757 = vmul.f32 %v739, %v755
    %v758 = vstv %s618
    %vm759 = vcmp.lt.s32.totalorder %v758, %v300
    %v760 = vsel %vm759, 1, 0
    %761 = vset.pattern.permute.xlu0 0
    %762 = vperm.xlu0 %761, %v760
    %v763 = vpop.permute.xlu0 %762
    %vm764 = vcmp.eq.s32.totalorder %v763, 1
    %v765 = vsel %vm764, %v757, %v615
    %v766 = vsel %vm764, %v751, %v616
    %s767 = sadd.s32 %s307, 3
    %s768 = ssub.s32 4, %s307
    %s769 = scalar_lea.vmem [#allocation2], 24
    %v770 = vld [vmem:[%s769] sm:$0xff]
    %772 = vrot.lane.b32.xlu0 %v691, 32
    %v773 = vpop.permute.xlu0 %772
    %v774 = vsel %vm310, %v773, 0
    %776 = vmatpush.msra.mxu0 0.0
    %777 = vmatpush.msra.mxu0 0.0
    %778 = vmatpush.msra.mxu0 0.0
    %779 = vmatpush.msra.mxu0 0.0
    %780 = vmatpush.msra.mxu0 0.0
    %781 = vmatpush.msra.mxu0 0.0
    %782 = vmatpush.msra.mxu0 0.0
    %783 = vmatpush.msra.mxu0 0.0
    %784 = vmatpush.msra.mxu0 0.0
    %785 = vmatpush.msra.mxu0 0.0
    %786 = vmatpush.msra.mxu0 0.0
    %787 = vmatpush.msra.mxu0 0.0
    %788 = vmatpush.msra.mxu0 %v294
    %789 = vmatpush.msra.mxu0 %v293
    %790 = vmatpush.msra.mxu0 %v292
    %791 = vmatpush.msra.mxu0 %v291
    %792 = vmatmul.f32.gmra.mxu0 %v774
    %v793 = vpop.f32.mrf.mxu0
    %v794 = vadd.f32 0.0, %v793
    %795 = vdwg.mxu0
    %v796 = vadd.f32 %v770, %v794
    %v797 = vxor.u32 %v796, 2147483648
    %v798 = vmul.f32 %v797, 1.442695
    %v799 = vpow.pop %v798
    %v800 = vadd.f32 %v799, 1.0
    %v801 = vrcp.pop %v800
    %v802 = vmul.f32 %v800, %v801
    %v803 = vsub.f32 1.0, %v802
    %v804 = vmul.f32 %v801, %v803
    %v805 = vadd.f32 %v801, %v804
    %vm806 = vweird.f32 %v800
    %vm807 = vweird.f32 %v801
    %vm808 = vmor %vm806, %vm807
    %v809 = vsel %vm808, %v801, %v805
    %v810 = vand.u32 2147483647, %v800
    %vm811 = vcmp.eq.f32.partialorder %v810, 8.507059e+37
    %v812 = vand.u32 %v800, 2147483648
    %v813 = vor.u32 1.1754944e-38, %v812
    %v814 = vsel %vm811, %v813, %v809
    %v815 = vmul.f32 1.0, %v814
    %v816 = vtanh.pop %v796
    %v817 = vmul.f32 %v815, %v692
    %819 = vrot.lane.b32.xlu0 %v816, 64
    %v820 = vpop.permute.xlu0 %819
    %v822 = vmul.f32 %v815, %v820
    %824 = vrot.lane.b32.xlu0 %v822, 32
    %v825 = vpop.permute.xlu0 %824
    %v827 = vadd.f32 %v817, %v825
    %v828 = vtanh.pop %v827
    %830 = vrot.lane.b32.xlu0 %v828, 64
    %v831 = vpop.permute.xlu0 %830
    %v833 = vmul.f32 %v815, %v831
    %v834 = vstv %s767
    %vm835 = vcmp.lt.s32.totalorder %v834, %v300
    %v836 = vsel %vm835, 1, 0
    %837 = vset.pattern.permute.xlu0 0
    %838 = vperm.xlu0 %837, %v836
    %v839 = vpop.permute.xlu0 %838
    %vm840 = vcmp.eq.s32.totalorder %v839, 1
    %v841 = vsel %vm840, %v833, %v691
    %v842 = vsel %vm840, %v827, %v692
    %s843 = scalar_lea.vmem [#allocation3], 32
    %v844 = vld [vmem:[%s843] sm:$0xff]
    %846 = vrot.lane.b32.xlu0 %v765, 32
    %v847 = vpop.permute.xlu0 %846
    %v848 = vsel %vm310, %v847, 0
    %850 = vmatpush.msra.mxu0 0.0
    %851 = vmatpush.msra.mxu0 0.0
    %852 = vmatpush.msra.mxu0 0.0
    %853 = vmatpush.msra.mxu0 0.0
    %854 = vmatpush.msra.mxu0 0.0
    %855 = vmatpush.msra.mxu0 0.0
    %856 = vmatpush.msra.mxu0 0.0
    %857 = vmatpush.msra.mxu0 0.0
    %858 = vmatpush.msra.mxu0 0.0
    %859 = vmatpush.msra.mxu0 0.0
    %860 = vmatpush.msra.mxu0 0.0
    %861 = vmatpush.msra.mxu0 0.0
    %862 = vmatpush.msra.mxu0 %v299
    %863 = vmatpush.msra.mxu0 %v298
    %864 = vmatpush.msra.mxu0 %v297
    %865 = vmatpush.msra.mxu0 %v296
    %866 = vmatmul.f32.gmra.mxu0 %v848
    %v867 = vpop.f32.mrf.mxu0
    %v868 = vadd.f32 0.0, %v867
    %869 = vdwg.mxu0
    %v870 = vadd.f32 %v844, %v868
    %v871 = vxor.u32 %v870, 2147483648
    %v872 = vmul.f32 %v871, 1.442695
    %v873 = vpow.pop %v872
    %v874 = vadd.f32 %v873, 1.0
    %v875 = vrcp.pop %v874
    %v876 = vmul.f32 %v874, %v875
    %v877 = vsub.f32 1.0, %v876
    %v878 = vmul.f32 %v875, %v877
    %v879 = vadd.f32 %v875, %v878
    %vm880 = vweird.f32 %v874
    %vm881 = vweird.f32 %v875
    %vm882 = vmor %vm880, %vm881
    %v883 = vsel %vm882, %v875, %v879
    %v884 = vand.u32 2147483647, %v874
    %vm885 = vcmp.eq.f32.partialorder %v884, 8.507059e+37
    %v886 = vand.u32 %v874, 2147483648
    %v887 = vor.u32 1.1754944e-38, %v886
    %v888 = vsel %vm885, %v887, %v883
    %v889 = vmul.f32 1.0, %v888
    %v890 = vtanh.pop %v870
    %v891 = vmul.f32 %v889, %v766
    %893 = vrot.lane.b32.xlu0 %v890, 64
    %v894 = vpop.permute.xlu0 %893
    %v896 = vmul.f32 %v889, %v894
    %898 = vrot.lane.b32.xlu0 %v896, 32
    %v899 = vpop.permute.xlu0 %898
    %v901 = vadd.f32 %v891, %v899
    %v902 = vtanh.pop %v901
    %904 = vrot.lane.b32.xlu0 %v902, 64
    %v905 = vpop.permute.xlu0 %904
    %v907 = vmul.f32 %v889, %v905
    %v908 = vstv %s768
    %vm909 = vcmp.lt.s32.totalorder %v908, %v300
    %v910 = vsel %vm909, 1, 0
    %911 = vset.pattern.permute.xlu0 0
    %912 = vperm.xlu0 %911, %v910
    %v913 = vpop.permute.xlu0 %912
    %vm914 = vcmp.eq.s32.totalorder %v913, 1
    %v915 = vsel %vm914, %v907, %v765
    %v916 = vsel %vm914, %v901, %v766
    %s917 = sadd.s32 %s307, 4
    %s918 = ssub.s32 3, %s307
    %s919 = scalar_lea.vmem [#allocation2], 32
    %v920 = vld [vmem:[%s919] sm:$0xff]
    %922 = vrot.lane.b32.xlu0 %v841, 32
    %v923 = vpop.permute.xlu0 %922
    %v924 = vsel %vm310, %v923, 0
    %926 = vmatpush.msra.mxu0 0.0
    %927 = vmatpush.msra.mxu0 0.0
    %928 = vmatpush.msra.mxu0 0.0
    %929 = vmatpush.msra.mxu0 0.0
    %930 = vmatpush.msra.mxu0 0.0
    %931 = vmatpush.msra.mxu0 0.0
    %932 = vmatpush.msra.mxu0 0.0
    %933 = vmatpush.msra.mxu0 0.0
    %934 = vmatpush.msra.mxu0 0.0
    %935 = vmatpush.msra.mxu0 0.0
    %936 = vmatpush.msra.mxu0 0.0
    %937 = vmatpush.msra.mxu0 0.0
    %938 = vmatpush.msra.mxu0 %v294
    %939 = vmatpush.msra.mxu0 %v293
    %940 = vmatpush.msra.mxu0 %v292
    %941 = vmatpush.msra.mxu0 %v291
    %942 = vmatmul.f32.gmra.mxu0 %v924
    %v943 = vpop.f32.mrf.mxu0
    %v944 = vadd.f32 0.0, %v943
    %945 = vdwg.mxu0
    %v946 = vadd.f32 %v920, %v944
    %v947 = vxor.u32 %v946, 2147483648
    %v948 = vmul.f32 %v947, 1.442695
    %v949 = vpow.pop %v948
    %v950 = vadd.f32 %v949, 1.0
    %v951 = vrcp.pop %v950
    %v952 = vmul.f32 %v950, %v951
    %v953 = vsub.f32 1.0, %v952
    %v954 = vmul.f32 %v951, %v953
    %v955 = vadd.f32 %v951, %v954
    %vm956 = vweird.f32 %v950
    %vm957 = vweird.f32 %v951
    %vm958 = vmor %vm956, %vm957
    %v959 = vsel %vm958, %v951, %v955
    %v960 = vand.u32 2147483647, %v950
    %vm961 = vcmp.eq.f32.partialorder %v960, 8.507059e+37
    %v962 = vand.u32 %v950, 2147483648
    %v963 = vor.u32 1.1754944e-38, %v962
    %v964 = vsel %vm961, %v963, %v959
    %v965 = vmul.f32 1.0, %v964
    %v966 = vtanh.pop %v946
    %v967 = vmul.f32 %v965, %v842
    %969 = vrot.lane.b32.xlu0 %v966, 64
    %v970 = vpop.permute.xlu0 %969
    %v972 = vmul.f32 %v965, %v970
    %974 = vrot.lane.b32.xlu0 %v972, 32
    %v975 = vpop.permute.xlu0 %974
    %v977 = vadd.f32 %v967, %v975
    %v978 = vtanh.pop %v977
    %980 = vrot.lane.b32.xlu0 %v978, 64
    %v981 = vpop.permute.xlu0 %980
    %v983 = vmul.f32 %v965, %v981
    %v984 = vstv %s917
    %vm985 = vcmp.lt.s32.totalorder %v984, %v300
    %v986 = vsel %vm985, 1, 0
    %987 = vset.pattern.permute.xlu0 0
    %988 = vperm.xlu0 %987, %v986
    %v989 = vpop.permute.xlu0 %988
    %vm990 = vcmp.eq.s32.totalorder %v989, 1
    %v991 = vsel %vm990, %v983, %v841
    %v992 = vsel %vm990, %v977, %v842
    %s993 = scalar_lea.vmem [#allocation3], 24
    %v994 = vld [vmem:[%s993] sm:$0xff]
    %996 = vrot.lane.b32.xlu0 %v915, 32
    %v997 = vpop.permute.xlu0 %996
    %v998 = vsel %vm310, %v997, 0
    %1000 = vmatpush.msra.mxu0 0.0
    %1001 = vmatpush.msra.mxu0 0.0
    %1002 = vmatpush.msra.mxu0 0.0
    %1003 = vmatpush.msra.mxu0 0.0
    %1004 = vmatpush.msra.mxu0 0.0
    %1005 = vmatpush.msra.mxu0 0.0
    %1006 = vmatpush.msra.mxu0 0.0
    %1007 = vmatpush.msra.mxu0 0.0
    %1008 = vmatpush.msra.mxu0 0.0
    %1009 = vmatpush.msra.mxu0 0.0
    %1010 = vmatpush.msra.mxu0 0.0
    %1011 = vmatpush.msra.mxu0 0.0
    %1012 = vmatpush.msra.mxu0 %v299
    %1013 = vmatpush.msra.mxu0 %v298
    %1014 = vmatpush.msra.mxu0 %v297
    %1015 = vmatpush.msra.mxu0 %v296
    %1016 = vmatmul.f32.gmra.mxu0 %v998
    %v1017 = vpop.f32.mrf.mxu0
    %v1018 = vadd.f32 0.0, %v1017
    %1019 = vdwg.mxu0
    %v1020 = vadd.f32 %v994, %v1018
    %v1021 = vxor.u32 %v1020, 2147483648
    %v1022 = vmul.f32 %v1021, 1.442695
    %v1023 = vpow.pop %v1022
    %v1024 = vadd.f32 %v1023, 1.0
    %v1025 = vrcp.pop %v1024
    %v1026 = vmul.f32 %v1024, %v1025
    %v1027 = vsub.f32 1.0, %v1026
    %v1028 = vmul.f32 %v1025, %v1027
    %v1029 = vadd.f32 %v1025, %v1028
    %vm1030 = vweird.f32 %v1024
    %vm1031 = vweird.f32 %v1025
    %vm1032 = vmor %vm1030, %vm1031
    %v1033 = vsel %vm1032, %v1025, %v1029
    %v1034 = vand.u32 2147483647, %v1024
    %vm1035 = vcmp.eq.f32.partialorder %v1034, 8.507059e+37
    %v1036 = vand.u32 %v1024, 2147483648
    %v1037 = vor.u32 1.1754944e-38, %v1036
    %v1038 = vsel %vm1035, %v1037, %v1033
    %v1039 = vmul.f32 1.0, %v1038
    %v1040 = vtanh.pop %v1020
    %v1041 = vmul.f32 %v1039, %v916
    %1043 = vrot.lane.b32.xlu0 %v1040, 64
    %v1044 = vpop.permute.xlu0 %1043
    %v1046 = vmul.f32 %v1039, %v1044
    %1048 = vrot.lane.b32.xlu0 %v1046, 32
    %v1049 = vpop.permute.xlu0 %1048
    %v1051 = vadd.f32 %v1041, %v1049
    %v1052 = vtanh.pop %v1051
    %1054 = vrot.lane.b32.xlu0 %v1052, 64
    %v1055 = vpop.permute.xlu0 %1054
    %v1057 = vmul.f32 %v1039, %v1055
    %v1058 = vstv %s918
    %vm1059 = vcmp.lt.s32.totalorder %v1058, %v300
    %v1060 = vsel %vm1059, 1, 0
    %1061 = vset.pattern.permute.xlu0 0
    %1062 = vperm.xlu0 %1061, %v1060
    %v1063 = vpop.permute.xlu0 %1062
    %vm1064 = vcmp.eq.s32.totalorder %v1063, 1
    %v1065 = vsel %vm1064, %v1057, %v915
    %v1066 = vsel %vm1064, %v1051, %v916
    %s1067 = sadd.s32 %s307, 5
    %s1068 = ssub.s32 2, %s307
    %s1069 = scalar_lea.vmem [#allocation2], 40
    %v1070 = vld [vmem:[%s1069] sm:$0xff]
    %1072 = vrot.lane.b32.xlu0 %v991, 32
    %v1073 = vpop.permute.xlu0 %1072
    %v1074 = vsel %vm310, %v1073, 0
    %1076 = vmatpush.msra.mxu0 0.0
    %1077 = vmatpush.msra.mxu0 0.0
    %1078 = vmatpush.msra.mxu0 0.0
    %1079 = vmatpush.msra.mxu0 0.0
    %1080 = vmatpush.msra.mxu0 0.0
    %1081 = vmatpush.msra.mxu0 0.0
    %1082 = vmatpush.msra.mxu0 0.0
    %1083 = vmatpush.msra.mxu0 0.0
    %1084 = vmatpush.msra.mxu0 0.0
    %1085 = vmatpush.msra.mxu0 0.0
    %1086 = vmatpush.msra.mxu0 0.0
    %1087 = vmatpush.msra.mxu0 0.0
    %1088 = vmatpush.msra.mxu0 %v294
    %1089 = vmatpush.msra.mxu0 %v293
    %1090 = vmatpush.msra.mxu0 %v292
    %1091 = vmatpush.msra.mxu0 %v291
    %1092 = vmatmul.f32.gmra.mxu0 %v1074
    %v1093 = vpop.f32.mrf.mxu0
    %v1094 = vadd.f32 0.0, %v1093
    %1095 = vdwg.mxu0
    %v1096 = vadd.f32 %v1070, %v1094
    %v1097 = vxor.u32 %v1096, 2147483648
    %v1098 = vmul.f32 %v1097, 1.442695
    %v1099 = vpow.pop %v1098
    %v1100 = vadd.f32 %v1099, 1.0
    %v1101 = vrcp.pop %v1100
    %v1102 = vmul.f32 %v1100, %v1101
    %v1103 = vsub.f32 1.0, %v1102
    %v1104 = vmul.f32 %v1101, %v1103
    %v1105 = vadd.f32 %v1101, %v1104
    %vm1106 = vweird.f32 %v1100
    %vm1107 = vweird.f32 %v1101
    %vm1108 = vmor %vm1106, %vm1107
    %v1109 = vsel %vm1108, %v1101, %v1105
    %v1110 = vand.u32 2147483647, %v1100
    %vm1111 = vcmp.eq.f32.partialorder %v1110, 8.507059e+37
    %v1112 = vand.u32 %v1100, 2147483648
    %v1113 = vor.u32 1.1754944e-38, %v1112
    %v1114 = vsel %vm1111, %v1113, %v1109
    %v1115 = vmul.f32 1.0, %v1114
    %v1116 = vtanh.pop %v1096
    %v1117 = vmul.f32 %v1115, %v992
    %1119 = vrot.lane.b32.xlu0 %v1116, 64
    %v1120 = vpop.permute.xlu0 %1119
    %v1122 = vmul.f32 %v1115, %v1120
    %1124 = vrot.lane.b32.xlu0 %v1122, 32
    %v1125 = vpop.permute.xlu0 %1124
    %v1127 = vadd.f32 %v1117, %v1125
    %v1128 = vtanh.pop %v1127
    %1130 = vrot.lane.b32.xlu0 %v1128, 64
    %v1131 = vpop.permute.xlu0 %1130
    %v1133 = vmul.f32 %v1115, %v1131
    %v1134 = vstv %s1067
    %vm1135 = vcmp.lt.s32.totalorder %v1134, %v300
    %v1136 = vsel %vm1135, 1, 0
    %1137 = vset.pattern.permute.xlu0 0
    %1138 = vperm.xlu0 %1137, %v1136
    %v1139 = vpop.permute.xlu0 %1138
    %vm1140 = vcmp.eq.s32.totalorder %v1139, 1
    %v1141 = vsel %vm1140, %v1133, %v991
    %v1142 = vsel %vm1140, %v1127, %v992
    %s1143 = scalar_lea.vmem [#allocation3], 16
    %v1144 = vld [vmem:[%s1143] sm:$0xff]
    %1146 = vrot.lane.b32.xlu0 %v1065, 32
    %v1147 = vpop.permute.xlu0 %1146
    %v1148 = vsel %vm310, %v1147, 0
    %1150 = vmatpush.msra.mxu0 0.0
    %1151 = vmatpush.msra.mxu0 0.0
    %1152 = vmatpush.msra.mxu0 0.0
    %1153 = vmatpush.msra.mxu0 0.0
    %1154 = vmatpush.msra.mxu0 0.0
    %1155 = vmatpush.msra.mxu0 0.0
    %1156 = vmatpush.msra.mxu0 0.0
    %1157 = vmatpush.msra.mxu0 0.0
    %1158 = vmatpush.msra.mxu0 0.0
    %1159 = vmatpush.msra.mxu0 0.0
    %1160 = vmatpush.msra.mxu0 0.0
    %1161 = vmatpush.msra.mxu0 0.0
    %1162 = vmatpush.msra.mxu0 %v299
    %1163 = vmatpush.msra.mxu0 %v298
    %1164 = vmatpush.msra.mxu0 %v297
    %1165 = vmatpush.msra.mxu0 %v296
    %1166 = vmatmul.f32.gmra.mxu0 %v1148
    %v1167 = vpop.f32.mrf.mxu0
    %v1168 = vadd.f32 0.0, %v1167
    %1169 = vdwg.mxu0
    %v1170 = vadd.f32 %v1144, %v1168
    %v1171 = vxor.u32 %v1170, 2147483648
    %v1172 = vmul.f32 %v1171, 1.442695
    %v1173 = vpow.pop %v1172
    %v1174 = vadd.f32 %v1173, 1.0
    %v1175 = vrcp.pop %v1174
    %v1176 = vmul.f32 %v1174, %v1175
    %v1177 = vsub.f32 1.0, %v1176
    %v1178 = vmul.f32 %v1175, %v1177
    %v1179 = vadd.f32 %v1175, %v1178
    %vm1180 = vweird.f32 %v1174
    %vm1181 = vweird.f32 %v1175
    %vm1182 = vmor %vm1180, %vm1181
    %v1183 = vsel %vm1182, %v1175, %v1179
    %v1184 = vand.u32 2147483647, %v1174
    %vm1185 = vcmp.eq.f32.partialorder %v1184, 8.507059e+37
    %v1186 = vand.u32 %v1174, 2147483648
    %v1187 = vor.u32 1.1754944e-38, %v1186
    %v1188 = vsel %vm1185, %v1187, %v1183
    %v1189 = vmul.f32 1.0, %v1188
    %v1190 = vtanh.pop %v1170
    %v1191 = vmul.f32 %v1189, %v1066
    %1193 = vrot.lane.b32.xlu0 %v1190, 64
    %v1194 = vpop.permute.xlu0 %1193
    %v1196 = vmul.f32 %v1189, %v1194
    %1198 = vrot.lane.b32.xlu0 %v1196, 32
    %v1199 = vpop.permute.xlu0 %1198
    %v1201 = vadd.f32 %v1191, %v1199
    %v1202 = vtanh.pop %v1201
    %1204 = vrot.lane.b32.xlu0 %v1202, 64
    %v1205 = vpop.permute.xlu0 %1204
    %v1207 = vmul.f32 %v1189, %v1205
    %v1208 = vstv %s1068
    %vm1209 = vcmp.lt.s32.totalorder %v1208, %v300
    %v1210 = vsel %vm1209, 1, 0
    %1211 = vset.pattern.permute.xlu0 0
    %1212 = vperm.xlu0 %1211, %v1210
    %v1213 = vpop.permute.xlu0 %1212
    %vm1214 = vcmp.eq.s32.totalorder %v1213, 1
    %v1215 = vsel %vm1214, %v1207, %v1065
    %v1216 = vsel %vm1214, %v1201, %v1066
    %s1217 = sadd.s32 %s307, 6
    %s1218 = ssub.s32 1, %s307
    %s1219 = scalar_lea.vmem [#allocation2], 48
    %v1220 = vld [vmem:[%s1219] sm:$0xff]
    %1222 = vrot.lane.b32.xlu0 %v1141, 32
    %v1223 = vpop.permute.xlu0 %1222
    %v1224 = vsel %vm310, %v1223, 0
    %1226 = vmatpush.msra.mxu0 0.0
    %1227 = vmatpush.msra.mxu0 0.0
    %1228 = vmatpush.msra.mxu0 0.0
    %1229 = vmatpush.msra.mxu0 0.0
    %1230 = vmatpush.msra.mxu0 0.0
    %1231 = vmatpush.msra.mxu0 0.0
    %1232 = vmatpush.msra.mxu0 0.0
    %1233 = vmatpush.msra.mxu0 0.0
    %1234 = vmatpush.msra.mxu0 0.0
    %1235 = vmatpush.msra.mxu0 0.0
    %1236 = vmatpush.msra.mxu0 0.0
    %1237 = vmatpush.msra.mxu0 0.0
    %1238 = vmatpush.msra.mxu0 %v294
    %1239 = vmatpush.msra.mxu0 %v293
    %1240 = vmatpush.msra.mxu0 %v292
    %1241 = vmatpush.msra.mxu0 %v291
    %1242 = vmatmul.f32.gmra.mxu0 %v1224
    %v1243 = vpop.f32.mrf.mxu0
    %v1244 = vadd.f32 0.0, %v1243
    %1245 = vdwg.mxu0
    %v1246 = vadd.f32 %v1220, %v1244
    %v1247 = vxor.u32 %v1246, 2147483648
    %v1248 = vmul.f32 %v1247, 1.442695
    %v1249 = vpow.pop %v1248
    %v1250 = vadd.f32 %v1249, 1.0
    %v1251 = vrcp.pop %v1250
    %v1252 = vmul.f32 %v1250, %v1251
    %v1253 = vsub.f32 1.0, %v1252
    %v1254 = vmul.f32 %v1251, %v1253
    %v1255 = vadd.f32 %v1251, %v1254
    %vm1256 = vweird.f32 %v1250
    %vm1257 = vweird.f32 %v1251
    %vm1258 = vmor %vm1256, %vm1257
    %v1259 = vsel %vm1258, %v1251, %v1255
    %v1260 = vand.u32 2147483647, %v1250
    %vm1261 = vcmp.eq.f32.partialorder %v1260, 8.507059e+37
    %v1262 = vand.u32 %v1250, 2147483648
    %v1263 = vor.u32 1.1754944e-38, %v1262
    %v1264 = vsel %vm1261, %v1263, %v1259
    %v1265 = vmul.f32 1.0, %v1264
    %v1266 = vtanh.pop %v1246
    %v1267 = vmul.f32 %v1265, %v1142
    %1269 = vrot.lane.b32.xlu0 %v1266, 64
    %v1270 = vpop.permute.xlu0 %1269
    %v1272 = vmul.f32 %v1265, %v1270
    %1274 = vrot.lane.b32.xlu0 %v1272, 32
    %v1275 = vpop.permute.xlu0 %1274
    %v1277 = vadd.f32 %v1267, %v1275
    %v1278 = vtanh.pop %v1277
    %1280 = vrot.lane.b32.xlu0 %v1278, 64
    %v1281 = vpop.permute.xlu0 %1280
    %v1283 = vmul.f32 %v1265, %v1281
    %v1284 = vstv %s1217
    %vm1285 = vcmp.lt.s32.totalorder %v1284, %v300
    %v1286 = vsel %vm1285, 1, 0
    %1287 = vset.pattern.permute.xlu0 0
    %1288 = vperm.xlu0 %1287, %v1286
    %v1289 = vpop.permute.xlu0 %1288
    %vm1290 = vcmp.eq.s32.totalorder %v1289, 1
    %v1291 = vsel %vm1290, %v1283, %v1141
    %v1292 = vsel %vm1290, %v1277, %v1142
    %s1293 = scalar_lea.vmem [#allocation3], 8
    %v1294 = vld [vmem:[%s1293] sm:$0xff]
    %1296 = vrot.lane.b32.xlu0 %v1215, 32
    %v1297 = vpop.permute.xlu0 %1296
    %v1298 = vsel %vm310, %v1297, 0
    %1300 = vmatpush.msra.mxu0 0.0
    %1301 = vmatpush.msra.mxu0 0.0
    %1302 = vmatpush.msra.mxu0 0.0
    %1303 = vmatpush.msra.mxu0 0.0
    %1304 = vmatpush.msra.mxu0 0.0
    %1305 = vmatpush.msra.mxu0 0.0
    %1306 = vmatpush.msra.mxu0 0.0
    %1307 = vmatpush.msra.mxu0 0.0
    %1308 = vmatpush.msra.mxu0 0.0
    %1309 = vmatpush.msra.mxu0 0.0
    %1310 = vmatpush.msra.mxu0 0.0
    %1311 = vmatpush.msra.mxu0 0.0
    %1312 = vmatpush.msra.mxu0 %v299
    %1313 = vmatpush.msra.mxu0 %v298
    %1314 = vmatpush.msra.mxu0 %v297
    %1315 = vmatpush.msra.mxu0 %v296
    %1316 = vmatmul.f32.gmra.mxu0 %v1298
    %v1317 = vpop.f32.mrf.mxu0
    %v1318 = vadd.f32 0.0, %v1317
    %1319 = vdwg.mxu0
    %v1320 = vadd.f32 %v1294, %v1318
    %v1321 = vxor.u32 %v1320, 2147483648
    %v1322 = vmul.f32 %v1321, 1.442695
    %v1323 = vpow.pop %v1322
    %v1324 = vadd.f32 %v1323, 1.0
    %v1325 = vrcp.pop %v1324
    %v1326 = vmul.f32 %v1324, %v1325
    %v1327 = vsub.f32 1.0, %v1326
    %v1328 = vmul.f32 %v1325, %v1327
    %v1329 = vadd.f32 %v1325, %v1328
    %vm1330 = vweird.f32 %v1324
    %vm1331 = vweird.f32 %v1325
    %vm1332 = vmor %vm1330, %vm1331
    %v1333 = vsel %vm1332, %v1325, %v1329
    %v1334 = vand.u32 2147483647, %v1324
    %vm1335 = vcmp.eq.f32.partialorder %v1334, 8.507059e+37
    %v1336 = vand.u32 %v1324, 2147483648
    %v1337 = vor.u32 1.1754944e-38, %v1336
    %v1338 = vsel %vm1335, %v1337, %v1333
    %v1339 = vmul.f32 1.0, %v1338
    %v1340 = vtanh.pop %v1320
    %v1341 = vmul.f32 %v1339, %v1216
    %1343 = vrot.lane.b32.xlu0 %v1340, 64
    %v1344 = vpop.permute.xlu0 %1343
    %v1346 = vmul.f32 %v1339, %v1344
    %1348 = vrot.lane.b32.xlu0 %v1346, 32
    %v1349 = vpop.permute.xlu0 %1348
    %v1351 = vadd.f32 %v1341, %v1349
    %v1352 = vtanh.pop %v1351
    %1354 = vrot.lane.b32.xlu0 %v1352, 64
    %v1355 = vpop.permute.xlu0 %1354
    %v1357 = vmul.f32 %v1339, %v1355
    %v1358 = vstv %s1218
    %vm1359 = vcmp.lt.s32.totalorder %v1358, %v300
    %v1360 = vsel %vm1359, 1, 0
    %1361 = vset.pattern.permute.xlu0 0
    %1362 = vperm.xlu0 %1361, %v1360
    %v1363 = vpop.permute.xlu0 %1362
    %vm1364 = vcmp.eq.s32.totalorder %v1363, 1
    %v1365 = vsel %vm1364, %v1357, %v1215
    %v1366 = vsel %vm1364, %v1351, %v1216
    %s1367 = sadd.s32 %s307, 7
    %s1368 = ssub.s32 0, %s307
    %s1369 = scalar_lea.vmem [#allocation2], 56
    %v1370 = vld [vmem:[%s1369] sm:$0xff]
    %1372 = vrot.lane.b32.xlu0 %v1291, 32
    %v1373 = vpop.permute.xlu0 %1372
    %v1374 = vsel %vm310, %v1373, 0
    %1376 = vmatpush.msra.mxu0 0.0
    %1377 = vmatpush.msra.mxu0 0.0
    %1378 = vmatpush.msra.mxu0 0.0
    %1379 = vmatpush.msra.mxu0 0.0
    %1380 = vmatpush.msra.mxu0 0.0
    %1381 = vmatpush.msra.mxu0 0.0
    %1382 = vmatpush.msra.mxu0 0.0
    %1383 = vmatpush.msra.mxu0 0.0
    %1384 = vmatpush.msra.mxu0 0.0
    %1385 = vmatpush.msra.mxu0 0.0
    %1386 = vmatpush.msra.mxu0 0.0
    %1387 = vmatpush.msra.mxu0 0.0
    %1388 = vmatpush.msra.mxu0 %v294
    %1389 = vmatpush.msra.mxu0 %v293
    %1390 = vmatpush.msra.mxu0 %v292
    %1391 = vmatpush.msra.mxu0 %v291
    %1392 = vmatmul.f32.gmra.mxu0 %v1374
    %v1393 = vpop.f32.mrf.mxu0
    %v1394 = vadd.f32 0.0, %v1393
    %1395 = vdwg.mxu0
    %v1396 = vadd.f32 %v1370, %v1394
    %v1397 = vxor.u32 %v1396, 2147483648
    %v1398 = vmul.f32 %v1397, 1.442695
    %v1399 = vpow.pop %v1398
    %v1400 = vadd.f32 %v1399, 1.0
    %v1401 = vrcp.pop %v1400
    %v1402 = vmul.f32 %v1400, %v1401
    %v1403 = vsub.f32 1.0, %v1402
    %v1404 = vmul.f32 %v1401, %v1403
    %v1405 = vadd.f32 %v1401, %v1404
    %vm1406 = vweird.f32 %v1400
    %vm1407 = vweird.f32 %v1401
    %vm1408 = vmor %vm1406, %vm1407
    %v1409 = vsel %vm1408, %v1401, %v1405
    %v1410 = vand.u32 2147483647, %v1400
    %vm1411 = vcmp.eq.f32.partialorder %v1410, 8.507059e+37
    %v1412 = vand.u32 %v1400, 2147483648
    %v1413 = vor.u32 1.1754944e-38, %v1412
    %v1414 = vsel %vm1411, %v1413, %v1409
    %v1415 = vmul.f32 1.0, %v1414
    %v1416 = vtanh.pop %v1396
    %v1417 = vmul.f32 %v1415, %v1292
    %1419 = vrot.lane.b32.xlu0 %v1416, 64
    %v1420 = vpop.permute.xlu0 %1419
    %v1422 = vmul.f32 %v1415, %v1420
    %1424 = vrot.lane.b32.xlu0 %v1422, 32
    %v1425 = vpop.permute.xlu0 %1424
    %v1427 = vadd.f32 %v1417, %v1425
    %v1428 = vtanh.pop %v1427
    %1430 = vrot.lane.b32.xlu0 %v1428, 64
    %v1431 = vpop.permute.xlu0 %1430
    %v1433 = vmul.f32 %v1415, %v1431
    %v1434 = vstv %s1367
    %vm1435 = vcmp.lt.s32.totalorder %v1434, %v300
    %v1436 = vsel %vm1435, 1, 0
    %1437 = vset.pattern.permute.xlu0 0
    %1438 = vperm.xlu0 %1437, %v1436
    %v1439 = vpop.permute.xlu0 %1438
    %vm1440 = vcmp.eq.s32.totalorder %v1439, 1
    %v1441 = vsel %vm1440, %v1433, %v1291
    %v1442 = vsel %vm1440, %v1427, %v1292
    %v1443 = vld [vmem:[#allocation3] sm:$0xff]
    %1445 = vrot.lane.b32.xlu0 %v1365, 32
    %v1446 = vpop.permute.xlu0 %1445
    %v1447 = vsel %vm310, %v1446, 0
    %1449 = vmatpush.msra.mxu0 0.0
    %1450 = vmatpush.msra.mxu0 0.0
    %1451 = vmatpush.msra.mxu0 0.0
    %1452 = vmatpush.msra.mxu0 0.0
    %1453 = vmatpush.msra.mxu0 0.0
    %1454 = vmatpush.msra.mxu0 0.0
    %1455 = vmatpush.msra.mxu0 0.0
    %1456 = vmatpush.msra.mxu0 0.0
    %1457 = vmatpush.msra.mxu0 0.0
    %1458 = vmatpush.msra.mxu0 0.0
    %1459 = vmatpush.msra.mxu0 0.0
    %1460 = vmatpush.msra.mxu0 0.0
    %1461 = vmatpush.msra.mxu0 %v299
    %1462 = vmatpush.msra.mxu0 %v298
    %1463 = vmatpush.msra.mxu0 %v297
    %1464 = vmatpush.msra.mxu0 %v296
    %1465 = vmatmul.f32.gmra.mxu0 %v1447
    %v1466 = vpop.f32.mrf.mxu0
    %v1467 = vadd.f32 0.0, %v1466
    %1468 = vdwg.mxu0
    %v1469 = vadd.f32 %v1443, %v1467
    %v1470 = vxor.u32 %v1469, 2147483648
    %v1471 = vmul.f32 %v1470, 1.442695
    %v1472 = vpow.pop %v1471
    %v1473 = vadd.f32 %v1472, 1.0
    %v1474 = vrcp.pop %v1473
    %v1475 = vmul.f32 %v1473, %v1474
    %v1476 = vsub.f32 1.0, %v1475
    %v1477 = vmul.f32 %v1474, %v1476
    %v1478 = vadd.f32 %v1474, %v1477
    %vm1479 = vweird.f32 %v1473
    %vm1480 = vweird.f32 %v1474
    %vm1481 = vmor %vm1479, %vm1480
    %v1482 = vsel %vm1481, %v1474, %v1478
    %v1483 = vand.u32 2147483647, %v1473
    %vm1484 = vcmp.eq.f32.partialorder %v1483, 8.507059e+37
    %v1485 = vand.u32 %v1473, 2147483648
    %v1486 = vor.u32 1.1754944e-38, %v1485
    %v1487 = vsel %vm1484, %v1486, %v1482
    %v1488 = vmul.f32 1.0, %v1487
    %v1489 = vtanh.pop %v1469
    %v1490 = vmul.f32 %v1488, %v1366
    %1492 = vrot.lane.b32.xlu0 %v1489, 64
    %v1493 = vpop.permute.xlu0 %1492
    %v1495 = vmul.f32 %v1488, %v1493
    %1497 = vrot.lane.b32.xlu0 %v1495, 32
    %v1498 = vpop.permute.xlu0 %1497
    %v1500 = vadd.f32 %v1490, %v1498
    %v1501 = vtanh.pop %v1500
    %1503 = vrot.lane.b32.xlu0 %v1501, 64
    %v1504 = vpop.permute.xlu0 %1503
    %v1506 = vmul.f32 %v1488, %v1504
    %v1507 = vstv %s1368
    %vm1508 = vcmp.lt.s32.totalorder %v1507, %v300
    %v1509 = vsel %vm1508, 1, 0
    %1510 = vset.pattern.permute.xlu0 0
    %1511 = vperm.xlu0 %1510, %v1509
    %v1512 = vpop.permute.xlu0 %1511
    %vm1513 = vcmp.eq.s32.totalorder %v1512, 1
    %v1514 = vsel %vm1513, %v1506, %v1365
    %v1515 = vsel %vm1513, %v1500, %v1366
    %1517 = vrot.lane.b32.xlu0 %v1441, 32
    %v1518 = vpop.permute.xlu0 %1517
    %1520 = vst.msk [vmem:[#allocation4] sm:$0xff] %vm310, %v1518
    %1522 = vrot.lane.b32.xlu0 %v1442, 96
    %v1523 = vpop.permute.xlu0 %1522
    %1525 = vst.msk [vmem:[#allocation5] sm:$0xff] %vm310, %v1523
    %1527 = vrot.lane.b32.xlu0 %v1514, 32
    %v1528 = vpop.permute.xlu0 %1527
    %1530 = vst.msk [vmem:[%s303] sm:$0xff] %vm310, %v1528
    %1532 = vrot.lane.b32.xlu0 %v1515, 96
    %v1533 = vpop.permute.xlu0 %1532
    %1535 = vst.msk [vmem:[%s305] sm:$0xff] %vm310, %v1533
    %1536 = vst.msk [vmem:[#allocation14] sm:$0xff] %vm310, %v1518
    %s1537 = scalar_lea.vmem [#allocation14], 8
    %1538 = vst.msk [vmem:[%s1537] sm:$0xff] %vm310, %v1528
    // Predicated region
    $region46: #{tpu_custom_call.1} parent=1 // pred_check
      _
    $region47: #{tpu_custom_call.1} parent=1 // pred_check_branch
      %1540 = sbr.rel (0) target = $region49
    $region48: #{tpu_custom_call.1} parent=1 // pred_region
      %1542 = vsyncadd [#allocation8], 0
      %s1543 = sshll.u32 [#allocation14], 4
      %s1544 = int_to_ptr.vmem [resolvable:$true] %s1543
      %s1545 = sshll.u32 %s6, 4
      %s1546 = int_to_ptr.hbm [resolvable:$true] %s1545
      %1551 = dma.vmem_to_hbm [thread:$0]  %s1544, 256, %s1546, [#allocation8], 128, 128, 8
    $region49: #{tpu_custom_call.1} parent=1 // pred_fallthru
      _
    // Predicated region
    $region50: #{tpu_custom_call.1} parent=1 // pred_check
      _
    $region51: #{tpu_custom_call.1} parent=1 // pred_check_branch
      %1553 = sbr.rel (0) target = $region53
    $region52: #{tpu_custom_call.1} parent=1 // pred_region
      %1555 = dma.done [#allocation8], 256
    $region53: #{tpu_custom_call.1} parent=1 // pred_fallthru
      _
    %1556 = vsyncpa [#allocation7], 1
    %1557 = vsyncpa [#allocation10], 1
    %1558 = vsyncpa [#allocation13], 1
    %1559 = vsyncpa [#allocation8], 1

</llo_original>
